<compile_context>
chip_gen: v7x
topology: tpu7x:2x2x1
jax: 0.10.0
libtpu: 0.0.40
codegen_flags: <defaults>
</compile_context>

<pallas_src>
import functools

import jax
import jax.numpy as jnp
from jax.experimental import pallas as pl
from jax.experimental.pallas import tpu as pltpu


def _round_up(x: int, m: int) -> int:
    return ((x + m - 1) // m) * m


def _device_defaults():
    """Per-generation defaults: counts dtype + batch tile."""
    try:
        kind = jax.devices()[0].device_kind.lower()
    except Exception:  # pragma: no cover - defensive
        kind = ""
    if "v6" in kind or "v7" in kind:
        # bf16 VALU is native; halves the resident counts-strip bytes.
        return jnp.bfloat16, 512
    # v5e (and anything unknown): no bf16 VPU -> keep f32 counts, smaller tB
    # so the [tB, tS] f32 strip stays inside the vreg file.
    return jnp.float32, 256


def ebc_pooled_kernel(idx_ref, len_ref, emb_ref, out_ref, *, tS, counts_dtype):
    # idx_ref: [1, tB, L]   int32 jagged indices (padded slots hold garbage)
    # len_ref: [1, tB, 1]   int32 bag lengths (0 for padded batch rows)
    # emb_ref: [1, tE, D]   bf16 table tile (rows [e*tE, (e+1)*tE))
    # out_ref: [tB, D]      f32, resident across the E (reduction) grid axis
    e = pl.program_id(2)

    @pl.when(e == 0)
    def _init():
        out_ref[...] = jnp.zeros_like(out_ref)

    idx = idx_ref[0]            # [tB, L]
    lens = len_ref[0]           # [tB, 1]
    tB, L = idx.shape
    tE = emb_ref.shape[1]

    # Sentinel-mask padded slots once per grid step (cheap: tB x L compare +
    # select). A -1 sentinel can never match a row id >= 0.
    slot = jax.lax.broadcasted_iota(jnp.int32, (1, L), 1)
    idxm = jnp.where(slot < lens, idx, -1)                      # [tB, L]

    # Strip-mine the counts accumulation over tE: the live accumulator is
    # [tB, tS] (<= ~128 KiB) independent of the E tile streamed per grid step.
    n_strips = tE // tS
    for s in range(n_strips):                                    # static loop
        row_ids = (e * tE + s * tS
                   + jax.lax.broadcasted_iota(jnp.int32, (1, tS), 1))  # [1,tS]

        # counts[b, r] = #occurrences of row r in bag b, built with a per-slot
        # 2-D accumulate (no [tB, lc, tE] intermediate, no axis-1 reduction).
        counts = jnp.zeros((tB, tS), counts_dtype)
        for l in range(L):                                       # static, small
            hit = (idxm[:, l:l + 1] == row_ids)                  # [tB, tS]
            counts = counts + hit.astype(counts_dtype)

        # Sum-pooled embedding bag == counts @ table strip; bf16 x bf16 on the
        # MXU with f32 accumulation into the resident output block.
        emb_strip = emb_ref[0, s * tS:(s + 1) * tS, :]           # [tS, D]
        out_ref[...] += jnp.dot(counts.astype(jnp.bfloat16), emb_strip,
                                preferred_element_type=jnp.float32)


def prepare_tables(tables, *, tE=512, tS=128):
    """One-time table preprocessing (hoisted out of the per-step forward):
    cast to bf16 (MXU-native, half the HBM bytes) and pad rows to the E tile.

    tables: [F, E, D] float -> returns (emb [F, E_pad, D] bf16, tE)
    """
    F, E, D = tables.shape
    del F, D
    tE = _round_up(min(tE, _round_up(E, tS)), tS)
    E_pad = _round_up(E, tE)
    emb = jnp.pad(tables.astype(jnp.bfloat16), ((0, 0), (0, E_pad - E), (0, 0)))
    return emb, tE


def ebc_forward(padded_idx, lengths, emb, *, tE, tB=None, tS=128,
                counts_dtype=None):
    """EmbeddingBagCollection forward (sum pooling).

    padded_idx: [F, B, L]     int32  padded jagged indices
    lengths:    [F, B]        int32  bag lengths
    emb:        [F, E_pad, D] bf16   tables from prepare_tables()
    returns:    [B, F*D]      f32    KeyedTensor dense values (key order = table order)
    """
    F, B, L = padded_idx.shape
    F2, E_pad, D = emb.shape
    assert F2 == F
    assert D % 128 == 0, "embedding dim must be a multiple of 128 (lane width)"
    assert E_pad % tE == 0 and tE % tS == 0

    dflt_dtype, dflt_tb = _device_defaults()
    if counts_dtype is None:
        counts_dtype = dflt_dtype
    if tB is None:
        tB = dflt_tb
    # bf16 counts are only exact for counts <= 256 (bounded by L).
    if counts_dtype == jnp.bfloat16 and L > 256:
        counts_dtype = jnp.float32

    # Pad B to a sublane multiple and the B tile. No L padding needed: the idx
    # block always covers the full L axis.
    B_pad = _round_up(B, 8)
    tB = min(_round_up(tB, 8), B_pad)
    B_pad = _round_up(B_pad, tB)
    # v7x has 2 TensorCores: keep (B_pad//tB) * F >= 2 when possible.
    if F == 1 and B_pad // tB < 2 and B_pad >= 16:
        tB = _round_up(B_pad // 2, 8)
        B_pad = _round_up(B_pad, tB)

    idx = jnp.pad(padded_idx.astype(jnp.int32), ((0, 0), (0, B_pad - B), (0, 0)))
    lens = jnp.pad(lengths.astype(jnp.int32), ((0, 0), (0, B_pad - B)))
    lens = lens.reshape(F, B_pad, 1)

    grid = (B_pad // tB, F, E_pad // tE)          # reduction (E) axis last

    # Advisory cost model: compare+add stream over every (bag, slot, row) pair
    # plus the MXU MACs; tables are re-streamed once per B tile.
    flops = 2 * B_pad * L * E_pad * F + 2 * B_pad * E_pad * D * F
    bytes_accessed = (idx.size * 4 + lens.size * 4
                      + (B_pad // tB) * emb.size * 2
                      + B_pad * F * D * 4)

    # VMEM request from the real tile footprint (double-buffered inputs +
    # output block + slack), capped at 32 MiB for v7x's 64 MiB VMEM.
    in_blk = tB * L * 4 + tB * 4 + tE * D * 2
    out_blk = tB * D * 4
    vmem_limit = min(32 << 20,
                     _round_up(2 * in_blk + 2 * out_blk + (4 << 20), 1 << 20))

    out = pl.pallas_call(
        functools.partial(ebc_pooled_kernel, tS=tS, counts_dtype=counts_dtype),
        out_shape=jax.ShapeDtypeStruct((B_pad, F * D), jnp.float32),
        grid_spec=pltpu.PrefetchScalarGridSpec(
            num_scalar_prefetch=0,
            grid=grid,
            in_specs=[
                pl.BlockSpec((1, tB, L), lambda b, f, e: (f, b, 0)),
                pl.BlockSpec((1, tB, 1), lambda b, f, e: (f, b, 0)),
                pl.BlockSpec((1, tE, D), lambda b, f, e: (f, e, 0)),
            ],
            # Output written directly in KeyedTensor layout: feature f owns
            # lane block f of [B_pad, F*D]; block index constant across e
            # -> resident f32 accumulator, lane-dense stores.
            out_specs=pl.BlockSpec((tB, D), lambda b, f, e: (b, f)),
        ),
        compiler_params=pltpu.CompilerParams(
            dimension_semantics=("parallel", "parallel", "arbitrary"),
            vmem_limit_bytes=vmem_limit,
        ),
        cost_estimate=pl.CostEstimate(flops=flops, transcendentals=0,
                                      bytes_accessed=bytes_accessed),
    )(idx, lens, emb)

    return out[:B]   # [B, F*D]


if __name__ == "__main__":
    # Small, deterministic synthetic EBC config (no checkpoint load).
    F = 2      # number of features / embedding tables ("table_0", "table_1")
    E = 1024   # rows per embedding table (exercises the E-reduction grid axis)
    D = 128    # embedding dim (lane-dense output blocks)
    B = 2      # batch size
    L = 16     # max bag length (jagged lengths padded up to L)

    key = jax.random.PRNGKey(0)
    k_tab, k_len, k_idx = jax.random.split(key, 3)

    tables = (jax.random.normal(k_tab, (F, E, D), jnp.float32) * 0.1
              ).astype(jnp.bfloat16)
    lengths = jax.random.randint(k_len, (F, B), 1, L + 1).astype(jnp.int32)
    padded_idx = jax.random.randint(k_idx, (F, B, L), 0, E).astype(jnp.int32)

    # One-time table prep (outside the benchmarked forward).
    emb, tE = prepare_tables(tables, tE=512)

    out = ebc_forward(padded_idx, lengths, emb, tE=tE)
    out = jax.block_until_ready(out)

    # Pure-JAX reference: masked gather + sum pooling, concatenated per key.
    mask = (jnp.arange(L)[None, None, :] < lengths[:, :, None]).astype(jnp.float32)
    tab_f32 = tables.astype(jnp.float32)
    ref_parts = []
    for f in range(F):
        gathered = tab_f32[f][padded_idx[f]] * mask[f][:, :, None]   # [B, L, D]
        ref_parts.append(gathered.sum(axis=1))                       # [B, D]
    ref = jnp.concatenate(ref_parts, axis=1)                         # [B, F*D]

    assert out.shape == (B, F * D)
    assert jnp.allclose(out, ref, atol=1e-3, rtol=1e-3), "mismatch vs reference"

    print("KERNEL_OK")
</pallas_src>

<mosaic_0001>
module attributes {stable_mosaic.version = 11 : i64} {
  func.func @ebc_pooled_kernel(%arg0: i32, %arg1: i32, %arg2: i32, %arg3: memref<1x8x16xi32, #tpu.memory_space<vmem>>, %arg4: memref<1x8x1xi32, #tpu.memory_space<vmem>>, %arg5: memref<1x512x128xbf16, #tpu.memory_space<vmem>>, %arg6: memref<8x128xf32, #tpu.memory_space<vmem>>) attributes {dimension_semantics = [#tpu.dimension_semantics<parallel>, #tpu.dimension_semantics<parallel>, #tpu.dimension_semantics<arbitrary>], iteration_bounds = array<i64: 1, 2, 2>, scalar_prefetch = 0 : i64, scratch_operands = 0 : i64, tpu.core_type = #tpu.core_type<tc>, window_params = [{transform_indices = @transform_0, window_bounds = array<i64: 1, 8, 16>}, {transform_indices = @transform_1, window_bounds = array<i64: 1, 8, 1>}, {transform_indices = @transform_2, window_bounds = array<i64: 1, 512, 128>}, {transform_indices = @transform_3, window_bounds = array<i64: 8, 128>}]} {
    %c0_i32 = arith.constant 0 : i32
    %0 = arith.cmpi eq, %arg2, %c0_i32 : i32
    %1 = arith.extui %0 : i1 to i32
    %c0_i32_0 = arith.constant 0 : i32
    %2 = arith.cmpi ne, %1, %c0_i32_0 : i32
    scf.if %2 {
      %cst_42 = arith.constant 0.000000e+00 : f32
      %513 = vector.broadcast %cst_42 : f32 to vector<8x128xf32>
      %c0_43 = arith.constant 0 : index
      %c0_44 = arith.constant 0 : index
      %514 = vector.load %arg6[%c0_43, %c0_44] : memref<8x128xf32, #tpu.memory_space<vmem>>, vector<8x128xf32>
      tpu.vector_store %arg6[%c0_43, %c0_44], %513 {strides = array<i32>} : memref<8x128xf32, #tpu.memory_space<vmem>>, vector<8x128xf32>,
    } else {
    }
    %c0 = arith.constant 0 : index
    %c0_1 = arith.constant 0 : index
    %c0_2 = arith.constant 0 : index
    %3 = vector.load %arg3[%c0, %c0_1, %c0_2] : memref<1x8x16xi32, #tpu.memory_space<vmem>>, vector<1x8x16xi32>
    %4 = vector.shape_cast %3 : vector<1x8x16xi32> to vector<8x16xi32>
    %c0_3 = arith.constant 0 : index
    %c0_4 = arith.constant 0 : index
    %c0_5 = arith.constant 0 : index
    %5 = vector.load %arg4[%c0_3, %c0_4, %c0_5] : memref<1x8x1xi32, #tpu.memory_space<vmem>>, vector<1x8x1xi32>
    %6 = vector.shape_cast %5 : vector<1x8x1xi32> to vector<8x1xi32>
    %7 = tpu.iota {dimensions = array<i32: 1>} : vector<1x16xi32>
    %8 = vector.broadcast %7 : vector<1x16xi32> to vector<8x16xi32>
    %9 = vector.broadcast %6 : vector<8x1xi32> to vector<8x16xi32>
    %10 = arith.cmpi slt, %8, %9 : vector<8x16xi32>
    %c-1_i32 = arith.constant -1 : i32
    %11 = vector.broadcast %c-1_i32 : i32 to vector<8x16xi32>
    %12 = arith.select %10, %4, %11 : vector<8x16xi1>, vector<8x16xi32>
    %c512_i32 = arith.constant 512 : i32
    %13 = arith.muli %arg2, %c512_i32 : i32
    %c0_i32_6 = arith.constant 0 : i32
    %14 = arith.addi %13, %c0_i32_6 : i32
    %15 = tpu.iota {dimensions = array<i32: 1>} : vector<1x128xi32>
    %16 = vector.broadcast %14 : i32 to vector<1x128xi32>
    %17 = arith.addi %16, %15 : vector<1x128xi32>
    %cst = arith.constant 0.000000e+00 : f32
    %18 = vector.broadcast %cst : f32 to vector<8x128xf32>
    %19 = vector.extract_strided_slice %12 {offsets = [0, 0], sizes = [8, 1], strides = [1, 1]} : vector<8x16xi32> to vector<8x1xi32>
    %20 = vector.broadcast %19 : vector<8x1xi32> to vector<8x128xi32>
    %21 = vector.broadcast %17 : vector<1x128xi32> to vector<8x128xi32>
    %22 = arith.cmpi eq, %20, %21 : vector<8x128xi32>
    %23 = arith.extui %22 : vector<8x128xi1> to vector<8x128xi32>
    %24 = arith.sitofp %23 : vector<8x128xi32> to vector<8x128xf32>
    %25 = arith.addf %18, %24 : vector<8x128xf32>
    %26 = vector.extract_strided_slice %12 {offsets = [0, 1], sizes = [8, 1], strides = [1, 1]} : vector<8x16xi32> to vector<8x1xi32>
    %27 = vector.broadcast %26 : vector<8x1xi32> to vector<8x128xi32>
    %28 = vector.broadcast %17 : vector<1x128xi32> to vector<8x128xi32>
    %29 = arith.cmpi eq, %27, %28 : vector<8x128xi32>
    %30 = arith.extui %29 : vector<8x128xi1> to vector<8x128xi32>
    %31 = arith.sitofp %30 : vector<8x128xi32> to vector<8x128xf32>
    %32 = arith.addf %25, %31 : vector<8x128xf32>
    %33 = vector.extract_strided_slice %12 {offsets = [0, 2], sizes = [8, 1], strides = [1, 1]} : vector<8x16xi32> to vector<8x1xi32>
    %34 = vector.broadcast %33 : vector<8x1xi32> to vector<8x128xi32>
    %35 = vector.broadcast %17 : vector<1x128xi32> to vector<8x128xi32>
    %36 = arith.cmpi eq, %34, %35 : vector<8x128xi32>
    %37 = arith.extui %36 : vector<8x128xi1> to vector<8x128xi32>
    %38 = arith.sitofp %37 : vector<8x128xi32> to vector<8x128xf32>
    %39 = arith.addf %32, %38 : vector<8x128xf32>
    %40 = vector.extract_strided_slice %12 {offsets = [0, 3], sizes = [8, 1], strides = [1, 1]} : vector<8x16xi32> to vector<8x1xi32>
    %41 = vector.broadcast %40 : vector<8x1xi32> to vector<8x128xi32>
    %42 = vector.broadcast %17 : vector<1x128xi32> to vector<8x128xi32>
    %43 = arith.cmpi eq, %41, %42 : vector<8x128xi32>
    %44 = arith.extui %43 : vector<8x128xi1> to vector<8x128xi32>
    %45 = arith.sitofp %44 : vector<8x128xi32> to vector<8x128xf32>
    %46 = arith.addf %39, %45 : vector<8x128xf32>
    %47 = vector.extract_strided_slice %12 {offsets = [0, 4], sizes = [8, 1], strides = [1, 1]} : vector<8x16xi32> to vector<8x1xi32>
    %48 = vector.broadcast %47 : vector<8x1xi32> to vector<8x128xi32>
    %49 = vector.broadcast %17 : vector<1x128xi32> to vector<8x128xi32>
    %50 = arith.cmpi eq, %48, %49 : vector<8x128xi32>
    %51 = arith.extui %50 : vector<8x128xi1> to vector<8x128xi32>
    %52 = arith.sitofp %51 : vector<8x128xi32> to vector<8x128xf32>
    %53 = arith.addf %46, %52 : vector<8x128xf32>
    %54 = vector.extract_strided_slice %12 {offsets = [0, 5], sizes = [8, 1], strides = [1, 1]} : vector<8x16xi32> to vector<8x1xi32>
    %55 = vector.broadcast %54 : vector<8x1xi32> to vector<8x128xi32>
    %56 = vector.broadcast %17 : vector<1x128xi32> to vector<8x128xi32>
    %57 = arith.cmpi eq, %55, %56 : vector<8x128xi32>
    %58 = arith.extui %57 : vector<8x128xi1> to vector<8x128xi32>
    %59 = arith.sitofp %58 : vector<8x128xi32> to vector<8x128xf32>
    %60 = arith.addf %53, %59 : vector<8x128xf32>
    %61 = vector.extract_strided_slice %12 {offsets = [0, 6], sizes = [8, 1], strides = [1, 1]} : vector<8x16xi32> to vector<8x1xi32>
    %62 = vector.broadcast %61 : vector<8x1xi32> to vector<8x128xi32>
    %63 = vector.broadcast %17 : vector<1x128xi32> to vector<8x128xi32>
    %64 = arith.cmpi eq, %62, %63 : vector<8x128xi32>
    %65 = arith.extui %64 : vector<8x128xi1> to vector<8x128xi32>
    %66 = arith.sitofp %65 : vector<8x128xi32> to vector<8x128xf32>
    %67 = arith.addf %60, %66 : vector<8x128xf32>
    %68 = vector.extract_strided_slice %12 {offsets = [0, 7], sizes = [8, 1], strides = [1, 1]} : vector<8x16xi32> to vector<8x1xi32>
    %69 = vector.broadcast %68 : vector<8x1xi32> to vector<8x128xi32>
    %70 = vector.broadcast %17 : vector<1x128xi32> to vector<8x128xi32>
    %71 = arith.cmpi eq, %69, %70 : vector<8x128xi32>
    %72 = arith.extui %71 : vector<8x128xi1> to vector<8x128xi32>
    %73 = arith.sitofp %72 : vector<8x128xi32> to vector<8x128xf32>
    %74 = arith.addf %67, %73 : vector<8x128xf32>
    %75 = vector.extract_strided_slice %12 {offsets = [0, 8], sizes = [8, 1], strides = [1, 1]} : vector<8x16xi32> to vector<8x1xi32>
    %76 = vector.broadcast %75 : vector<8x1xi32> to vector<8x128xi32>
    %77 = vector.broadcast %17 : vector<1x128xi32> to vector<8x128xi32>
    %78 = arith.cmpi eq, %76, %77 : vector<8x128xi32>
    %79 = arith.extui %78 : vector<8x128xi1> to vector<8x128xi32>
    %80 = arith.sitofp %79 : vector<8x128xi32> to vector<8x128xf32>
    %81 = arith.addf %74, %80 : vector<8x128xf32>
    %82 = vector.extract_strided_slice %12 {offsets = [0, 9], sizes = [8, 1], strides = [1, 1]} : vector<8x16xi32> to vector<8x1xi32>
    %83 = vector.broadcast %82 : vector<8x1xi32> to vector<8x128xi32>
    %84 = vector.broadcast %17 : vector<1x128xi32> to vector<8x128xi32>
    %85 = arith.cmpi eq, %83, %84 : vector<8x128xi32>
    %86 = arith.extui %85 : vector<8x128xi1> to vector<8x128xi32>
    %87 = arith.sitofp %86 : vector<8x128xi32> to vector<8x128xf32>
    %88 = arith.addf %81, %87 : vector<8x128xf32>
    %89 = vector.extract_strided_slice %12 {offsets = [0, 10], sizes = [8, 1], strides = [1, 1]} : vector<8x16xi32> to vector<8x1xi32>
    %90 = vector.broadcast %89 : vector<8x1xi32> to vector<8x128xi32>
    %91 = vector.broadcast %17 : vector<1x128xi32> to vector<8x128xi32>
    %92 = arith.cmpi eq, %90, %91 : vector<8x128xi32>
    %93 = arith.extui %92 : vector<8x128xi1> to vector<8x128xi32>
    %94 = arith.sitofp %93 : vector<8x128xi32> to vector<8x128xf32>
    %95 = arith.addf %88, %94 : vector<8x128xf32>
    %96 = vector.extract_strided_slice %12 {offsets = [0, 11], sizes = [8, 1], strides = [1, 1]} : vector<8x16xi32> to vector<8x1xi32>
    %97 = vector.broadcast %96 : vector<8x1xi32> to vector<8x128xi32>
    %98 = vector.broadcast %17 : vector<1x128xi32> to vector<8x128xi32>
    %99 = arith.cmpi eq, %97, %98 : vector<8x128xi32>
    %100 = arith.extui %99 : vector<8x128xi1> to vector<8x128xi32>
    %101 = arith.sitofp %100 : vector<8x128xi32> to vector<8x128xf32>
    %102 = arith.addf %95, %101 : vector<8x128xf32>
    %103 = vector.extract_strided_slice %12 {offsets = [0, 12], sizes = [8, 1], strides = [1, 1]} : vector<8x16xi32> to vector<8x1xi32>
    %104 = vector.broadcast %103 : vector<8x1xi32> to vector<8x128xi32>
    %105 = vector.broadcast %17 : vector<1x128xi32> to vector<8x128xi32>
    %106 = arith.cmpi eq, %104, %105 : vector<8x128xi32>
    %107 = arith.extui %106 : vector<8x128xi1> to vector<8x128xi32>
    %108 = arith.sitofp %107 : vector<8x128xi32> to vector<8x128xf32>
    %109 = arith.addf %102, %108 : vector<8x128xf32>
    %110 = vector.extract_strided_slice %12 {offsets = [0, 13], sizes = [8, 1], strides = [1, 1]} : vector<8x16xi32> to vector<8x1xi32>
    %111 = vector.broadcast %110 : vector<8x1xi32> to vector<8x128xi32>
    %112 = vector.broadcast %17 : vector<1x128xi32> to vector<8x128xi32>
    %113 = arith.cmpi eq, %111, %112 : vector<8x128xi32>
    %114 = arith.extui %113 : vector<8x128xi1> to vector<8x128xi32>
    %115 = arith.sitofp %114 : vector<8x128xi32> to vector<8x128xf32>
    %116 = arith.addf %109, %115 : vector<8x128xf32>
    %117 = vector.extract_strided_slice %12 {offsets = [0, 14], sizes = [8, 1], strides = [1, 1]} : vector<8x16xi32> to vector<8x1xi32>
    %118 = vector.broadcast %117 : vector<8x1xi32> to vector<8x128xi32>
    %119 = vector.broadcast %17 : vector<1x128xi32> to vector<8x128xi32>
    %120 = arith.cmpi eq, %118, %119 : vector<8x128xi32>
    %121 = arith.extui %120 : vector<8x128xi1> to vector<8x128xi32>
    %122 = arith.sitofp %121 : vector<8x128xi32> to vector<8x128xf32>
    %123 = arith.addf %116, %122 : vector<8x128xf32>
    %124 = vector.extract_strided_slice %12 {offsets = [0, 15], sizes = [8, 1], strides = [1, 1]} : vector<8x16xi32> to vector<8x1xi32>
    %125 = vector.broadcast %124 : vector<8x1xi32> to vector<8x128xi32>
    %126 = vector.broadcast %17 : vector<1x128xi32> to vector<8x128xi32>
    %127 = arith.cmpi eq, %125, %126 : vector<8x128xi32>
    %128 = arith.extui %127 : vector<8x128xi1> to vector<8x128xi32>
    %129 = arith.sitofp %128 : vector<8x128xi32> to vector<8x128xf32>
    %130 = arith.addf %123, %129 : vector<8x128xf32>
    %c0_7 = arith.constant 0 : index
    %c0_8 = arith.constant 0 : index
    %c0_9 = arith.constant 0 : index
    %131 = vector.load %arg5[%c0_7, %c0_8, %c0_9] : memref<1x512x128xbf16, #tpu.memory_space<vmem>>, vector<1x128x128xbf16>
    %132 = vector.shape_cast %131 : vector<1x128x128xbf16> to vector<128x128xbf16>
    %c0_10 = arith.constant 0 : index
    %c0_11 = arith.constant 0 : index
    %133 = vector.load %arg6[%c0_10, %c0_11] : memref<8x128xf32, #tpu.memory_space<vmem>>, vector<8x128xf32>
    %134 = arith.truncf %130 : vector<8x128xf32> to vector<8x128xbf16>
    %cst_12 = arith.constant dense<0.000000e+00> : vector<8x128xf32>
    %135 = tpu.matmul %134, %132, %cst_12 {dimension_numbers = #tpu.dot_dimension_numbers<[1], [0], [0], [1], [0, 0, 1, 1], [], []>} : vector<8x128xbf16>, vector<128x128xbf16>, vector<8x128xf32> -> vector<8x128xf32>
    %136 = arith.addf %133, %135 : vector<8x128xf32>
    %c0_13 = arith.constant 0 : index
    %c0_14 = arith.constant 0 : index
    %137 = vector.load %arg6[%c0_13, %c0_14] : memref<8x128xf32, #tpu.memory_space<vmem>>, vector<8x128xf32>
    tpu.vector_store %arg6[%c0_13, %c0_14], %136 {strides = array<i32>} : memref<8x128xf32, #tpu.memory_space<vmem>>, vector<8x128xf32>,
    %c512_i32_15 = arith.constant 512 : i32
    %138 = arith.muli %arg2, %c512_i32_15 : i32
    %c128_i32 = arith.constant 128 : i32
    %139 = arith.addi %138, %c128_i32 : i32
    %140 = tpu.iota {dimensions = array<i32: 1>} : vector<1x128xi32>
    %141 = vector.broadcast %139 : i32 to vector<1x128xi32>
    %142 = arith.addi %141, %140 : vector<1x128xi32>
    %cst_16 = arith.constant 0.000000e+00 : f32
    %143 = vector.broadcast %cst_16 : f32 to vector<8x128xf32>
    %144 = vector.extract_strided_slice %12 {offsets = [0, 0], sizes = [8, 1], strides = [1, 1]} : vector<8x16xi32> to vector<8x1xi32>
    %145 = vector.broadcast %144 : vector<8x1xi32> to vector<8x128xi32>
    %146 = vector.broadcast %142 : vector<1x128xi32> to vector<8x128xi32>
    %147 = arith.cmpi eq, %145, %146 : vector<8x128xi32>
    %148 = arith.extui %147 : vector<8x128xi1> to vector<8x128xi32>
    %149 = arith.sitofp %148 : vector<8x128xi32> to vector<8x128xf32>
    %150 = arith.addf %143, %149 : vector<8x128xf32>
    %151 = vector.extract_strided_slice %12 {offsets = [0, 1], sizes = [8, 1], strides = [1, 1]} : vector<8x16xi32> to vector<8x1xi32>
    %152 = vector.broadcast %151 : vector<8x1xi32> to vector<8x128xi32>
    %153 = vector.broadcast %142 : vector<1x128xi32> to vector<8x128xi32>
    %154 = arith.cmpi eq, %152, %153 : vector<8x128xi32>
    %155 = arith.extui %154 : vector<8x128xi1> to vector<8x128xi32>
    %156 = arith.sitofp %155 : vector<8x128xi32> to vector<8x128xf32>
    %157 = arith.addf %150, %156 : vector<8x128xf32>
    %158 = vector.extract_strided_slice %12 {offsets = [0, 2], sizes = [8, 1], strides = [1, 1]} : vector<8x16xi32> to vector<8x1xi32>
    %159 = vector.broadcast %158 : vector<8x1xi32> to vector<8x128xi32>
    %160 = vector.broadcast %142 : vector<1x128xi32> to vector<8x128xi32>
    %161 = arith.cmpi eq, %159, %160 : vector<8x128xi32>
    %162 = arith.extui %161 : vector<8x128xi1> to vector<8x128xi32>
    %163 = arith.sitofp %162 : vector<8x128xi32> to vector<8x128xf32>
    %164 = arith.addf %157, %163 : vector<8x128xf32>
    %165 = vector.extract_strided_slice %12 {offsets = [0, 3], sizes = [8, 1], strides = [1, 1]} : vector<8x16xi32> to vector<8x1xi32>
    %166 = vector.broadcast %165 : vector<8x1xi32> to vector<8x128xi32>
    %167 = vector.broadcast %142 : vector<1x128xi32> to vector<8x128xi32>
    %168 = arith.cmpi eq, %166, %167 : vector<8x128xi32>
    %169 = arith.extui %168 : vector<8x128xi1> to vector<8x128xi32>
    %170 = arith.sitofp %169 : vector<8x128xi32> to vector<8x128xf32>
    %171 = arith.addf %164, %170 : vector<8x128xf32>
    %172 = vector.extract_strided_slice %12 {offsets = [0, 4], sizes = [8, 1], strides = [1, 1]} : vector<8x16xi32> to vector<8x1xi32>
    %173 = vector.broadcast %172 : vector<8x1xi32> to vector<8x128xi32>
    %174 = vector.broadcast %142 : vector<1x128xi32> to vector<8x128xi32>
    %175 = arith.cmpi eq, %173, %174 : vector<8x128xi32>
    %176 = arith.extui %175 : vector<8x128xi1> to vector<8x128xi32>
    %177 = arith.sitofp %176 : vector<8x128xi32> to vector<8x128xf32>
    %178 = arith.addf %171, %177 : vector<8x128xf32>
    %179 = vector.extract_strided_slice %12 {offsets = [0, 5], sizes = [8, 1], strides = [1, 1]} : vector<8x16xi32> to vector<8x1xi32>
    %180 = vector.broadcast %179 : vector<8x1xi32> to vector<8x128xi32>
    %181 = vector.broadcast %142 : vector<1x128xi32> to vector<8x128xi32>
    %182 = arith.cmpi eq, %180, %181 : vector<8x128xi32>
    %183 = arith.extui %182 : vector<8x128xi1> to vector<8x128xi32>
    %184 = arith.sitofp %183 : vector<8x128xi32> to vector<8x128xf32>
    %185 = arith.addf %178, %184 : vector<8x128xf32>
    %186 = vector.extract_strided_slice %12 {offsets = [0, 6], sizes = [8, 1], strides = [1, 1]} : vector<8x16xi32> to vector<8x1xi32>
    %187 = vector.broadcast %186 : vector<8x1xi32> to vector<8x128xi32>
    %188 = vector.broadcast %142 : vector<1x128xi32> to vector<8x128xi32>
    %189 = arith.cmpi eq, %187, %188 : vector<8x128xi32>
    %190 = arith.extui %189 : vector<8x128xi1> to vector<8x128xi32>
    %191 = arith.sitofp %190 : vector<8x128xi32> to vector<8x128xf32>
    %192 = arith.addf %185, %191 : vector<8x128xf32>
    %193 = vector.extract_strided_slice %12 {offsets = [0, 7], sizes = [8, 1], strides = [1, 1]} : vector<8x16xi32> to vector<8x1xi32>
    %194 = vector.broadcast %193 : vector<8x1xi32> to vector<8x128xi32>
    %195 = vector.broadcast %142 : vector<1x128xi32> to vector<8x128xi32>
    %196 = arith.cmpi eq, %194, %195 : vector<8x128xi32>
    %197 = arith.extui %196 : vector<8x128xi1> to vector<8x128xi32>
    %198 = arith.sitofp %197 : vector<8x128xi32> to vector<8x128xf32>
    %199 = arith.addf %192, %198 : vector<8x128xf32>
    %200 = vector.extract_strided_slice %12 {offsets = [0, 8], sizes = [8, 1], strides = [1, 1]} : vector<8x16xi32> to vector<8x1xi32>
    %201 = vector.broadcast %200 : vector<8x1xi32> to vector<8x128xi32>
    %202 = vector.broadcast %142 : vector<1x128xi32> to vector<8x128xi32>
    %203 = arith.cmpi eq, %201, %202 : vector<8x128xi32>
    %204 = arith.extui %203 : vector<8x128xi1> to vector<8x128xi32>
    %205 = arith.sitofp %204 : vector<8x128xi32> to vector<8x128xf32>
    %206 = arith.addf %199, %205 : vector<8x128xf32>
    %207 = vector.extract_strided_slice %12 {offsets = [0, 9], sizes = [8, 1], strides = [1, 1]} : vector<8x16xi32> to vector<8x1xi32>
    %208 = vector.broadcast %207 : vector<8x1xi32> to vector<8x128xi32>
    %209 = vector.broadcast %142 : vector<1x128xi32> to vector<8x128xi32>
    %210 = arith.cmpi eq, %208, %209 : vector<8x128xi32>
    %211 = arith.extui %210 : vector<8x128xi1> to vector<8x128xi32>
    %212 = arith.sitofp %211 : vector<8x128xi32> to vector<8x128xf32>
    %213 = arith.addf %206, %212 : vector<8x128xf32>
    %214 = vector.extract_strided_slice %12 {offsets = [0, 10], sizes = [8, 1], strides = [1, 1]} : vector<8x16xi32> to vector<8x1xi32>
    %215 = vector.broadcast %214 : vector<8x1xi32> to vector<8x128xi32>
    %216 = vector.broadcast %142 : vector<1x128xi32> to vector<8x128xi32>
    %217 = arith.cmpi eq, %215, %216 : vector<8x128xi32>
    %218 = arith.extui %217 : vector<8x128xi1> to vector<8x128xi32>
    %219 = arith.sitofp %218 : vector<8x128xi32> to vector<8x128xf32>
    %220 = arith.addf %213, %219 : vector<8x128xf32>
    %221 = vector.extract_strided_slice %12 {offsets = [0, 11], sizes = [8, 1], strides = [1, 1]} : vector<8x16xi32> to vector<8x1xi32>
    %222 = vector.broadcast %221 : vector<8x1xi32> to vector<8x128xi32>
    %223 = vector.broadcast %142 : vector<1x128xi32> to vector<8x128xi32>
    %224 = arith.cmpi eq, %222, %223 : vector<8x128xi32>
    %225 = arith.extui %224 : vector<8x128xi1> to vector<8x128xi32>
    %226 = arith.sitofp %225 : vector<8x128xi32> to vector<8x128xf32>
    %227 = arith.addf %220, %226 : vector<8x128xf32>
    %228 = vector.extract_strided_slice %12 {offsets = [0, 12], sizes = [8, 1], strides = [1, 1]} : vector<8x16xi32> to vector<8x1xi32>
    %229 = vector.broadcast %228 : vector<8x1xi32> to vector<8x128xi32>
    %230 = vector.broadcast %142 : vector<1x128xi32> to vector<8x128xi32>
    %231 = arith.cmpi eq, %229, %230 : vector<8x128xi32>
    %232 = arith.extui %231 : vector<8x128xi1> to vector<8x128xi32>
    %233 = arith.sitofp %232 : vector<8x128xi32> to vector<8x128xf32>
    %234 = arith.addf %227, %233 : vector<8x128xf32>
    %235 = vector.extract_strided_slice %12 {offsets = [0, 13], sizes = [8, 1], strides = [1, 1]} : vector<8x16xi32> to vector<8x1xi32>
    %236 = vector.broadcast %235 : vector<8x1xi32> to vector<8x128xi32>
    %237 = vector.broadcast %142 : vector<1x128xi32> to vector<8x128xi32>
    %238 = arith.cmpi eq, %236, %237 : vector<8x128xi32>
    %239 = arith.extui %238 : vector<8x128xi1> to vector<8x128xi32>
    %240 = arith.sitofp %239 : vector<8x128xi32> to vector<8x128xf32>
    %241 = arith.addf %234, %240 : vector<8x128xf32>
    %242 = vector.extract_strided_slice %12 {offsets = [0, 14], sizes = [8, 1], strides = [1, 1]} : vector<8x16xi32> to vector<8x1xi32>
    %243 = vector.broadcast %242 : vector<8x1xi32> to vector<8x128xi32>
    %244 = vector.broadcast %142 : vector<1x128xi32> to vector<8x128xi32>
    %245 = arith.cmpi eq, %243, %244 : vector<8x128xi32>
    %246 = arith.extui %245 : vector<8x128xi1> to vector<8x128xi32>
    %247 = arith.sitofp %246 : vector<8x128xi32> to vector<8x128xf32>
    %248 = arith.addf %241, %247 : vector<8x128xf32>
    %249 = vector.extract_strided_slice %12 {offsets = [0, 15], sizes = [8, 1], strides = [1, 1]} : vector<8x16xi32> to vector<8x1xi32>
    %250 = vector.broadcast %249 : vector<8x1xi32> to vector<8x128xi32>
    %251 = vector.broadcast %142 : vector<1x128xi32> to vector<8x128xi32>
    %252 = arith.cmpi eq, %250, %251 : vector<8x128xi32>
    %253 = arith.extui %252 : vector<8x128xi1> to vector<8x128xi32>
    %254 = arith.sitofp %253 : vector<8x128xi32> to vector<8x128xf32>
    %255 = arith.addf %248, %254 : vector<8x128xf32>
    %c0_17 = arith.constant 0 : index
    %c128 = arith.constant 128 : index
    %c0_18 = arith.constant 0 : index
    %256 = vector.load %arg5[%c0_17, %c128, %c0_18] : memref<1x512x128xbf16, #tpu.memory_space<vmem>>, vector<1x128x128xbf16>
    %257 = vector.shape_cast %256 : vector<1x128x128xbf16> to vector<128x128xbf16>
    %c0_19 = arith.constant 0 : index
    %c0_20 = arith.constant 0 : index
    %258 = vector.load %arg6[%c0_19, %c0_20] : memref<8x128xf32, #tpu.memory_space<vmem>>, vector<8x128xf32>
    %259 = arith.truncf %255 : vector<8x128xf32> to vector<8x128xbf16>
    %cst_21 = arith.constant dense<0.000000e+00> : vector<8x128xf32>
    %260 = tpu.matmul %259, %257, %cst_21 {dimension_numbers = #tpu.dot_dimension_numbers<[1], [0], [0], [1], [0, 0, 1, 1], [], []>} : vector<8x128xbf16>, vector<128x128xbf16>, vector<8x128xf32> -> vector<8x128xf32>
    %261 = arith.addf %258, %260 : vector<8x128xf32>
    %c0_22 = arith.constant 0 : index
    %c0_23 = arith.constant 0 : index
    %262 = vector.load %arg6[%c0_22, %c0_23] : memref<8x128xf32, #tpu.memory_space<vmem>>, vector<8x128xf32>
    tpu.vector_store %arg6[%c0_22, %c0_23], %261 {strides = array<i32>} : memref<8x128xf32, #tpu.memory_space<vmem>>, vector<8x128xf32>,
    %c512_i32_24 = arith.constant 512 : i32
    %263 = arith.muli %arg2, %c512_i32_24 : i32
    %c256_i32 = arith.constant 256 : i32
    %264 = arith.addi %263, %c256_i32 : i32
    %265 = tpu.iota {dimensions = array<i32: 1>} : vector<1x128xi32>
    %266 = vector.broadcast %264 : i32 to vector<1x128xi32>
    %267 = arith.addi %266, %265 : vector<1x128xi32>
    %cst_25 = arith.constant 0.000000e+00 : f32
    %268 = vector.broadcast %cst_25 : f32 to vector<8x128xf32>
    %269 = vector.extract_strided_slice %12 {offsets = [0, 0], sizes = [8, 1], strides = [1, 1]} : vector<8x16xi32> to vector<8x1xi32>
    %270 = vector.broadcast %269 : vector<8x1xi32> to vector<8x128xi32>
    %271 = vector.broadcast %267 : vector<1x128xi32> to vector<8x128xi32>
    %272 = arith.cmpi eq, %270, %271 : vector<8x128xi32>
    %273 = arith.extui %272 : vector<8x128xi1> to vector<8x128xi32>
    %274 = arith.sitofp %273 : vector<8x128xi32> to vector<8x128xf32>
    %275 = arith.addf %268, %274 : vector<8x128xf32>
    %276 = vector.extract_strided_slice %12 {offsets = [0, 1], sizes = [8, 1], strides = [1, 1]} : vector<8x16xi32> to vector<8x1xi32>
    %277 = vector.broadcast %276 : vector<8x1xi32> to vector<8x128xi32>
    %278 = vector.broadcast %267 : vector<1x128xi32> to vector<8x128xi32>
    %279 = arith.cmpi eq, %277, %278 : vector<8x128xi32>
    %280 = arith.extui %279 : vector<8x128xi1> to vector<8x128xi32>
    %281 = arith.sitofp %280 : vector<8x128xi32> to vector<8x128xf32>
    %282 = arith.addf %275, %281 : vector<8x128xf32>
    %283 = vector.extract_strided_slice %12 {offsets = [0, 2], sizes = [8, 1], strides = [1, 1]} : vector<8x16xi32> to vector<8x1xi32>
    %284 = vector.broadcast %283 : vector<8x1xi32> to vector<8x128xi32>
    %285 = vector.broadcast %267 : vector<1x128xi32> to vector<8x128xi32>
    %286 = arith.cmpi eq, %284, %285 : vector<8x128xi32>
    %287 = arith.extui %286 : vector<8x128xi1> to vector<8x128xi32>
    %288 = arith.sitofp %287 : vector<8x128xi32> to vector<8x128xf32>
    %289 = arith.addf %282, %288 : vector<8x128xf32>
    %290 = vector.extract_strided_slice %12 {offsets = [0, 3], sizes = [8, 1], strides = [1, 1]} : vector<8x16xi32> to vector<8x1xi32>
    %291 = vector.broadcast %290 : vector<8x1xi32> to vector<8x128xi32>
    %292 = vector.broadcast %267 : vector<1x128xi32> to vector<8x128xi32>
    %293 = arith.cmpi eq, %291, %292 : vector<8x128xi32>
    %294 = arith.extui %293 : vector<8x128xi1> to vector<8x128xi32>
    %295 = arith.sitofp %294 : vector<8x128xi32> to vector<8x128xf32>
    %296 = arith.addf %289, %295 : vector<8x128xf32>
    %297 = vector.extract_strided_slice %12 {offsets = [0, 4], sizes = [8, 1], strides = [1, 1]} : vector<8x16xi32> to vector<8x1xi32>
    %298 = vector.broadcast %297 : vector<8x1xi32> to vector<8x128xi32>
    %299 = vector.broadcast %267 : vector<1x128xi32> to vector<8x128xi32>
    %300 = arith.cmpi eq, %298, %299 : vector<8x128xi32>
    %301 = arith.extui %300 : vector<8x128xi1> to vector<8x128xi32>
    %302 = arith.sitofp %301 : vector<8x128xi32> to vector<8x128xf32>
    %303 = arith.addf %296, %302 : vector<8x128xf32>
    %304 = vector.extract_strided_slice %12 {offsets = [0, 5], sizes = [8, 1], strides = [1, 1]} : vector<8x16xi32> to vector<8x1xi32>
    %305 = vector.broadcast %304 : vector<8x1xi32> to vector<8x128xi32>
    %306 = vector.broadcast %267 : vector<1x128xi32> to vector<8x128xi32>
    %307 = arith.cmpi eq, %305, %306 : vector<8x128xi32>
    %308 = arith.extui %307 : vector<8x128xi1> to vector<8x128xi32>
    %309 = arith.sitofp %308 : vector<8x128xi32> to vector<8x128xf32>
    %310 = arith.addf %303, %309 : vector<8x128xf32>
    %311 = vector.extract_strided_slice %12 {offsets = [0, 6], sizes = [8, 1], strides = [1, 1]} : vector<8x16xi32> to vector<8x1xi32>
    %312 = vector.broadcast %311 : vector<8x1xi32> to vector<8x128xi32>
    %313 = vector.broadcast %267 : vector<1x128xi32> to vector<8x128xi32>
    %314 = arith.cmpi eq, %312, %313 : vector<8x128xi32>
    %315 = arith.extui %314 : vector<8x128xi1> to vector<8x128xi32>
    %316 = arith.sitofp %315 : vector<8x128xi32> to vector<8x128xf32>
    %317 = arith.addf %310, %316 : vector<8x128xf32>
    %318 = vector.extract_strided_slice %12 {offsets = [0, 7], sizes = [8, 1], strides = [1, 1]} : vector<8x16xi32> to vector<8x1xi32>
    %319 = vector.broadcast %318 : vector<8x1xi32> to vector<8x128xi32>
    %320 = vector.broadcast %267 : vector<1x128xi32> to vector<8x128xi32>
    %321 = arith.cmpi eq, %319, %320 : vector<8x128xi32>
    %322 = arith.extui %321 : vector<8x128xi1> to vector<8x128xi32>
    %323 = arith.sitofp %322 : vector<8x128xi32> to vector<8x128xf32>
    %324 = arith.addf %317, %323 : vector<8x128xf32>
    %325 = vector.extract_strided_slice %12 {offsets = [0, 8], sizes = [8, 1], strides = [1, 1]} : vector<8x16xi32> to vector<8x1xi32>
    %326 = vector.broadcast %325 : vector<8x1xi32> to vector<8x128xi32>
    %327 = vector.broadcast %267 : vector<1x128xi32> to vector<8x128xi32>
    %328 = arith.cmpi eq, %326, %327 : vector<8x128xi32>
    %329 = arith.extui %328 : vector<8x128xi1> to vector<8x128xi32>
    %330 = arith.sitofp %329 : vector<8x128xi32> to vector<8x128xf32>
    %331 = arith.addf %324, %330 : vector<8x128xf32>
    %332 = vector.extract_strided_slice %12 {offsets = [0, 9], sizes = [8, 1], strides = [1, 1]} : vector<8x16xi32> to vector<8x1xi32>
    %333 = vector.broadcast %332 : vector<8x1xi32> to vector<8x128xi32>
    %334 = vector.broadcast %267 : vector<1x128xi32> to vector<8x128xi32>
    %335 = arith.cmpi eq, %333, %334 : vector<8x128xi32>
    %336 = arith.extui %335 : vector<8x128xi1> to vector<8x128xi32>
    %337 = arith.sitofp %336 : vector<8x128xi32> to vector<8x128xf32>
    %338 = arith.addf %331, %337 : vector<8x128xf32>
    %339 = vector.extract_strided_slice %12 {offsets = [0, 10], sizes = [8, 1], strides = [1, 1]} : vector<8x16xi32> to vector<8x1xi32>
    %340 = vector.broadcast %339 : vector<8x1xi32> to vector<8x128xi32>
    %341 = vector.broadcast %267 : vector<1x128xi32> to vector<8x128xi32>
    %342 = arith.cmpi eq, %340, %341 : vector<8x128xi32>
    %343 = arith.extui %342 : vector<8x128xi1> to vector<8x128xi32>
    %344 = arith.sitofp %343 : vector<8x128xi32> to vector<8x128xf32>
    %345 = arith.addf %338, %344 : vector<8x128xf32>
    %346 = vector.extract_strided_slice %12 {offsets = [0, 11], sizes = [8, 1], strides = [1, 1]} : vector<8x16xi32> to vector<8x1xi32>
    %347 = vector.broadcast %346 : vector<8x1xi32> to vector<8x128xi32>
    %348 = vector.broadcast %267 : vector<1x128xi32> to vector<8x128xi32>
    %349 = arith.cmpi eq, %347, %348 : vector<8x128xi32>
    %350 = arith.extui %349 : vector<8x128xi1> to vector<8x128xi32>
    %351 = arith.sitofp %350 : vector<8x128xi32> to vector<8x128xf32>
    %352 = arith.addf %345, %351 : vector<8x128xf32>
    %353 = vector.extract_strided_slice %12 {offsets = [0, 12], sizes = [8, 1], strides = [1, 1]} : vector<8x16xi32> to vector<8x1xi32>
    %354 = vector.broadcast %353 : vector<8x1xi32> to vector<8x128xi32>
    %355 = vector.broadcast %267 : vector<1x128xi32> to vector<8x128xi32>
    %356 = arith.cmpi eq, %354, %355 : vector<8x128xi32>
    %357 = arith.extui %356 : vector<8x128xi1> to vector<8x128xi32>
    %358 = arith.sitofp %357 : vector<8x128xi32> to vector<8x128xf32>
    %359 = arith.addf %352, %358 : vector<8x128xf32>
    %360 = vector.extract_strided_slice %12 {offsets = [0, 13], sizes = [8, 1], strides = [1, 1]} : vector<8x16xi32> to vector<8x1xi32>
    %361 = vector.broadcast %360 : vector<8x1xi32> to vector<8x128xi32>
    %362 = vector.broadcast %267 : vector<1x128xi32> to vector<8x128xi32>
    %363 = arith.cmpi eq, %361, %362 : vector<8x128xi32>
    %364 = arith.extui %363 : vector<8x128xi1> to vector<8x128xi32>
    %365 = arith.sitofp %364 : vector<8x128xi32> to vector<8x128xf32>
    %366 = arith.addf %359, %365 : vector<8x128xf32>
    %367 = vector.extract_strided_slice %12 {offsets = [0, 14], sizes = [8, 1], strides = [1, 1]} : vector<8x16xi32> to vector<8x1xi32>
    %368 = vector.broadcast %367 : vector<8x1xi32> to vector<8x128xi32>
    %369 = vector.broadcast %267 : vector<1x128xi32> to vector<8x128xi32>
    %370 = arith.cmpi eq, %368, %369 : vector<8x128xi32>
    %371 = arith.extui %370 : vector<8x128xi1> to vector<8x128xi32>
    %372 = arith.sitofp %371 : vector<8x128xi32> to vector<8x128xf32>
    %373 = arith.addf %366, %372 : vector<8x128xf32>
    %374 = vector.extract_strided_slice %12 {offsets = [0, 15], sizes = [8, 1], strides = [1, 1]} : vector<8x16xi32> to vector<8x1xi32>
    %375 = vector.broadcast %374 : vector<8x1xi32> to vector<8x128xi32>
    %376 = vector.broadcast %267 : vector<1x128xi32> to vector<8x128xi32>
    %377 = arith.cmpi eq, %375, %376 : vector<8x128xi32>
    %378 = arith.extui %377 : vector<8x128xi1> to vector<8x128xi32>
    %379 = arith.sitofp %378 : vector<8x128xi32> to vector<8x128xf32>
    %380 = arith.addf %373, %379 : vector<8x128xf32>
    %c0_26 = arith.constant 0 : index
    %c256 = arith.constant 256 : index
    %c0_27 = arith.constant 0 : index
    %381 = vector.load %arg5[%c0_26, %c256, %c0_27] : memref<1x512x128xbf16, #tpu.memory_space<vmem>>, vector<1x128x128xbf16>
    %382 = vector.shape_cast %381 : vector<1x128x128xbf16> to vector<128x128xbf16>
    %c0_28 = arith.constant 0 : index
    %c0_29 = arith.constant 0 : index
    %383 = vector.load %arg6[%c0_28, %c0_29] : memref<8x128xf32, #tpu.memory_space<vmem>>, vector<8x128xf32>
    %384 = arith.truncf %380 : vector<8x128xf32> to vector<8x128xbf16>
    %cst_30 = arith.constant dense<0.000000e+00> : vector<8x128xf32>
    %385 = tpu.matmul %384, %382, %cst_30 {dimension_numbers = #tpu.dot_dimension_numbers<[1], [0], [0], [1], [0, 0, 1, 1], [], []>} : vector<8x128xbf16>, vector<128x128xbf16>, vector<8x128xf32> -> vector<8x128xf32>
    %386 = arith.addf %383, %385 : vector<8x128xf32>
    %c0_31 = arith.constant 0 : index
    %c0_32 = arith.constant 0 : index
    %387 = vector.load %arg6[%c0_31, %c0_32] : memref<8x128xf32, #tpu.memory_space<vmem>>, vector<8x128xf32>
    tpu.vector_store %arg6[%c0_31, %c0_32], %386 {strides = array<i32>} : memref<8x128xf32, #tpu.memory_space<vmem>>, vector<8x128xf32>,
    %c512_i32_33 = arith.constant 512 : i32
    %388 = arith.muli %arg2, %c512_i32_33 : i32
    %c384_i32 = arith.constant 384 : i32
    %389 = arith.addi %388, %c384_i32 : i32
    %390 = tpu.iota {dimensions = array<i32: 1>} : vector<1x128xi32>
    %391 = vector.broadcast %389 : i32 to vector<1x128xi32>
    %392 = arith.addi %391, %390 : vector<1x128xi32>
    %cst_34 = arith.constant 0.000000e+00 : f32
    %393 = vector.broadcast %cst_34 : f32 to vector<8x128xf32>
    %394 = vector.extract_strided_slice %12 {offsets = [0, 0], sizes = [8, 1], strides = [1, 1]} : vector<8x16xi32> to vector<8x1xi32>
    %395 = vector.broadcast %394 : vector<8x1xi32> to vector<8x128xi32>
    %396 = vector.broadcast %392 : vector<1x128xi32> to vector<8x128xi32>
    %397 = arith.cmpi eq, %395, %396 : vector<8x128xi32>
    %398 = arith.extui %397 : vector<8x128xi1> to vector<8x128xi32>
    %399 = arith.sitofp %398 : vector<8x128xi32> to vector<8x128xf32>
    %400 = arith.addf %393, %399 : vector<8x128xf32>
    %401 = vector.extract_strided_slice %12 {offsets = [0, 1], sizes = [8, 1], strides = [1, 1]} : vector<8x16xi32> to vector<8x1xi32>
    %402 = vector.broadcast %401 : vector<8x1xi32> to vector<8x128xi32>
    %403 = vector.broadcast %392 : vector<1x128xi32> to vector<8x128xi32>
    %404 = arith.cmpi eq, %402, %403 : vector<8x128xi32>
    %405 = arith.extui %404 : vector<8x128xi1> to vector<8x128xi32>
    %406 = arith.sitofp %405 : vector<8x128xi32> to vector<8x128xf32>
    %407 = arith.addf %400, %406 : vector<8x128xf32>
    %408 = vector.extract_strided_slice %12 {offsets = [0, 2], sizes = [8, 1], strides = [1, 1]} : vector<8x16xi32> to vector<8x1xi32>
    %409 = vector.broadcast %408 : vector<8x1xi32> to vector<8x128xi32>
    %410 = vector.broadcast %392 : vector<1x128xi32> to vector<8x128xi32>
    %411 = arith.cmpi eq, %409, %410 : vector<8x128xi32>
    %412 = arith.extui %411 : vector<8x128xi1> to vector<8x128xi32>
    %413 = arith.sitofp %412 : vector<8x128xi32> to vector<8x128xf32>
    %414 = arith.addf %407, %413 : vector<8x128xf32>
    %415 = vector.extract_strided_slice %12 {offsets = [0, 3], sizes = [8, 1], strides = [1, 1]} : vector<8x16xi32> to vector<8x1xi32>
    %416 = vector.broadcast %415 : vector<8x1xi32> to vector<8x128xi32>
    %417 = vector.broadcast %392 : vector<1x128xi32> to vector<8x128xi32>
    %418 = arith.cmpi eq, %416, %417 : vector<8x128xi32>
    %419 = arith.extui %418 : vector<8x128xi1> to vector<8x128xi32>
    %420 = arith.sitofp %419 : vector<8x128xi32> to vector<8x128xf32>
    %421 = arith.addf %414, %420 : vector<8x128xf32>
    %422 = vector.extract_strided_slice %12 {offsets = [0, 4], sizes = [8, 1], strides = [1, 1]} : vector<8x16xi32> to vector<8x1xi32>
    %423 = vector.broadcast %422 : vector<8x1xi32> to vector<8x128xi32>
    %424 = vector.broadcast %392 : vector<1x128xi32> to vector<8x128xi32>
    %425 = arith.cmpi eq, %423, %424 : vector<8x128xi32>
    %426 = arith.extui %425 : vector<8x128xi1> to vector<8x128xi32>
    %427 = arith.sitofp %426 : vector<8x128xi32> to vector<8x128xf32>
    %428 = arith.addf %421, %427 : vector<8x128xf32>
    %429 = vector.extract_strided_slice %12 {offsets = [0, 5], sizes = [8, 1], strides = [1, 1]} : vector<8x16xi32> to vector<8x1xi32>
    %430 = vector.broadcast %429 : vector<8x1xi32> to vector<8x128xi32>
    %431 = vector.broadcast %392 : vector<1x128xi32> to vector<8x128xi32>
    %432 = arith.cmpi eq, %430, %431 : vector<8x128xi32>
    %433 = arith.extui %432 : vector<8x128xi1> to vector<8x128xi32>
    %434 = arith.sitofp %433 : vector<8x128xi32> to vector<8x128xf32>
    %435 = arith.addf %428, %434 : vector<8x128xf32>
    %436 = vector.extract_strided_slice %12 {offsets = [0, 6], sizes = [8, 1], strides = [1, 1]} : vector<8x16xi32> to vector<8x1xi32>
    %437 = vector.broadcast %436 : vector<8x1xi32> to vector<8x128xi32>
    %438 = vector.broadcast %392 : vector<1x128xi32> to vector<8x128xi32>
    %439 = arith.cmpi eq, %437, %438 : vector<8x128xi32>
    %440 = arith.extui %439 : vector<8x128xi1> to vector<8x128xi32>
    %441 = arith.sitofp %440 : vector<8x128xi32> to vector<8x128xf32>
    %442 = arith.addf %435, %441 : vector<8x128xf32>
    %443 = vector.extract_strided_slice %12 {offsets = [0, 7], sizes = [8, 1], strides = [1, 1]} : vector<8x16xi32> to vector<8x1xi32>
    %444 = vector.broadcast %443 : vector<8x1xi32> to vector<8x128xi32>
    %445 = vector.broadcast %392 : vector<1x128xi32> to vector<8x128xi32>
    %446 = arith.cmpi eq, %444, %445 : vector<8x128xi32>
    %447 = arith.extui %446 : vector<8x128xi1> to vector<8x128xi32>
    %448 = arith.sitofp %447 : vector<8x128xi32> to vector<8x128xf32>
    %449 = arith.addf %442, %448 : vector<8x128xf32>
    %450 = vector.extract_strided_slice %12 {offsets = [0, 8], sizes = [8, 1], strides = [1, 1]} : vector<8x16xi32> to vector<8x1xi32>
    %451 = vector.broadcast %450 : vector<8x1xi32> to vector<8x128xi32>
    %452 = vector.broadcast %392 : vector<1x128xi32> to vector<8x128xi32>
    %453 = arith.cmpi eq, %451, %452 : vector<8x128xi32>
    %454 = arith.extui %453 : vector<8x128xi1> to vector<8x128xi32>
    %455 = arith.sitofp %454 : vector<8x128xi32> to vector<8x128xf32>
    %456 = arith.addf %449, %455 : vector<8x128xf32>
    %457 = vector.extract_strided_slice %12 {offsets = [0, 9], sizes = [8, 1], strides = [1, 1]} : vector<8x16xi32> to vector<8x1xi32>
    %458 = vector.broadcast %457 : vector<8x1xi32> to vector<8x128xi32>
    %459 = vector.broadcast %392 : vector<1x128xi32> to vector<8x128xi32>
    %460 = arith.cmpi eq, %458, %459 : vector<8x128xi32>
    %461 = arith.extui %460 : vector<8x128xi1> to vector<8x128xi32>
    %462 = arith.sitofp %461 : vector<8x128xi32> to vector<8x128xf32>
    %463 = arith.addf %456, %462 : vector<8x128xf32>
    %464 = vector.extract_strided_slice %12 {offsets = [0, 10], sizes = [8, 1], strides = [1, 1]} : vector<8x16xi32> to vector<8x1xi32>
    %465 = vector.broadcast %464 : vector<8x1xi32> to vector<8x128xi32>
    %466 = vector.broadcast %392 : vector<1x128xi32> to vector<8x128xi32>
    %467 = arith.cmpi eq, %465, %466 : vector<8x128xi32>
    %468 = arith.extui %467 : vector<8x128xi1> to vector<8x128xi32>
    %469 = arith.sitofp %468 : vector<8x128xi32> to vector<8x128xf32>
    %470 = arith.addf %463, %469 : vector<8x128xf32>
    %471 = vector.extract_strided_slice %12 {offsets = [0, 11], sizes = [8, 1], strides = [1, 1]} : vector<8x16xi32> to vector<8x1xi32>
    %472 = vector.broadcast %471 : vector<8x1xi32> to vector<8x128xi32>
    %473 = vector.broadcast %392 : vector<1x128xi32> to vector<8x128xi32>
    %474 = arith.cmpi eq, %472, %473 : vector<8x128xi32>
    %475 = arith.extui %474 : vector<8x128xi1> to vector<8x128xi32>
    %476 = arith.sitofp %475 : vector<8x128xi32> to vector<8x128xf32>
    %477 = arith.addf %470, %476 : vector<8x128xf32>
    %478 = vector.extract_strided_slice %12 {offsets = [0, 12], sizes = [8, 1], strides = [1, 1]} : vector<8x16xi32> to vector<8x1xi32>
    %479 = vector.broadcast %478 : vector<8x1xi32> to vector<8x128xi32>
    %480 = vector.broadcast %392 : vector<1x128xi32> to vector<8x128xi32>
    %481 = arith.cmpi eq, %479, %480 : vector<8x128xi32>
    %482 = arith.extui %481 : vector<8x128xi1> to vector<8x128xi32>
    %483 = arith.sitofp %482 : vector<8x128xi32> to vector<8x128xf32>
    %484 = arith.addf %477, %483 : vector<8x128xf32>
    %485 = vector.extract_strided_slice %12 {offsets = [0, 13], sizes = [8, 1], strides = [1, 1]} : vector<8x16xi32> to vector<8x1xi32>
    %486 = vector.broadcast %485 : vector<8x1xi32> to vector<8x128xi32>
    %487 = vector.broadcast %392 : vector<1x128xi32> to vector<8x128xi32>
    %488 = arith.cmpi eq, %486, %487 : vector<8x128xi32>
    %489 = arith.extui %488 : vector<8x128xi1> to vector<8x128xi32>
    %490 = arith.sitofp %489 : vector<8x128xi32> to vector<8x128xf32>
    %491 = arith.addf %484, %490 : vector<8x128xf32>
    %492 = vector.extract_strided_slice %12 {offsets = [0, 14], sizes = [8, 1], strides = [1, 1]} : vector<8x16xi32> to vector<8x1xi32>
    %493 = vector.broadcast %492 : vector<8x1xi32> to vector<8x128xi32>
    %494 = vector.broadcast %392 : vector<1x128xi32> to vector<8x128xi32>
    %495 = arith.cmpi eq, %493, %494 : vector<8x128xi32>
    %496 = arith.extui %495 : vector<8x128xi1> to vector<8x128xi32>
    %497 = arith.sitofp %496 : vector<8x128xi32> to vector<8x128xf32>
    %498 = arith.addf %491, %497 : vector<8x128xf32>
    %499 = vector.extract_strided_slice %12 {offsets = [0, 15], sizes = [8, 1], strides = [1, 1]} : vector<8x16xi32> to vector<8x1xi32>
    %500 = vector.broadcast %499 : vector<8x1xi32> to vector<8x128xi32>
    %501 = vector.broadcast %392 : vector<1x128xi32> to vector<8x128xi32>
    %502 = arith.cmpi eq, %500, %501 : vector<8x128xi32>
    %503 = arith.extui %502 : vector<8x128xi1> to vector<8x128xi32>
    %504 = arith.sitofp %503 : vector<8x128xi32> to vector<8x128xf32>
    %505 = arith.addf %498, %504 : vector<8x128xf32>
    %c0_35 = arith.constant 0 : index
    %c384 = arith.constant 384 : index
    %c0_36 = arith.constant 0 : index
    %506 = vector.load %arg5[%c0_35, %c384, %c0_36] : memref<1x512x128xbf16, #tpu.memory_space<vmem>>, vector<1x128x128xbf16>
    %507 = vector.shape_cast %506 : vector<1x128x128xbf16> to vector<128x128xbf16>
    %c0_37 = arith.constant 0 : index
    %c0_38 = arith.constant 0 : index
    %508 = vector.load %arg6[%c0_37, %c0_38] : memref<8x128xf32, #tpu.memory_space<vmem>>, vector<8x128xf32>
    %509 = arith.truncf %505 : vector<8x128xf32> to vector<8x128xbf16>
    %cst_39 = arith.constant dense<0.000000e+00> : vector<8x128xf32>
    %510 = tpu.matmul %509, %507, %cst_39 {dimension_numbers = #tpu.dot_dimension_numbers<[1], [0], [0], [1], [0, 0, 1, 1], [], []>} : vector<8x128xbf16>, vector<128x128xbf16>, vector<8x128xf32> -> vector<8x128xf32>
    %511 = arith.addf %508, %510 : vector<8x128xf32>
    %c0_40 = arith.constant 0 : index
    %c0_41 = arith.constant 0 : index
    %512 = vector.load %arg6[%c0_40, %c0_41] : memref<8x128xf32, #tpu.memory_space<vmem>>, vector<8x128xf32>
    tpu.vector_store %arg6[%c0_40, %c0_41], %511 {strides = array<i32>} : memref<8x128xf32, #tpu.memory_space<vmem>>, vector<8x128xf32>,
    return
  }
  func.func @transform_0(%arg0: i32, %arg1: i32, %arg2: i32) -> (i32, i32, i32) {
    %c0_i32 = arith.constant 0 : i32
    %c0_i32_0 = arith.constant 0 : i32
    return %arg1, %arg0, %c0_i32 : i32, i32, i32
  }
  func.func @transform_1(%arg0: i32, %arg1: i32, %arg2: i32) -> (i32, i32, i32) {
    %c0_i32 = arith.constant 0 : i32
    %c0_i32_0 = arith.constant 0 : i32
    return %arg1, %arg0, %c0_i32 : i32, i32, i32
  }
  func.func @transform_2(%arg0: i32, %arg1: i32, %arg2: i32) -> (i32, i32, i32) {
    %c0_i32 = arith.constant 0 : i32
    %c0_i32_0 = arith.constant 0 : i32
    return %arg1, %arg2, %c0_i32 : i32, i32, i32
  }
  func.func @transform_3(%arg0: i32, %arg1: i32, %arg2: i32) -> (i32, i32) {
    %c0_i32 = arith.constant 0 : i32
    return %arg0, %arg1 : i32, i32
  }
}

</mosaic_0001>

<llo_original>
// kernel: tpu_custom_call.1
$region0: #{tpu_custom_call.1}
  #allocation0 [shape = 'u32[]', space=smem, size = 0x4, offset = 0x4, fixed_abs, tag = 'smem constant byte address 0x4 - core index']
  #allocation1 [shape = 'u32[144,128]{1,0:T(1,128)}', space=vmem, size = 0x12000, scoped, tag = 'internal scratch']
  %s0 = inlined_call_operand.vmem [shape: s32[2,8,16], index: 0, kind: input, shape index: {}]
  %s1 = inlined_call_operand.vmem [shape: s32[2,8,1], index: 1, kind: input, shape index: {}]
  %s2 = inlined_call_operand.hbm [shape: bf16[2,1024,128], index: 2, kind: input, shape index: {}]
  %s3 = inlined_call_operand.hbm [shape: f32[8,256], index: 3, kind: output, shape index: {}]
  %s4 = sld [smem:[#allocation0]]
  $region53: #{tpu_custom_call.1} parent=0
    _
  %s6 = ssub.s32 1, %s4
  %s7 = scalar_select 0, %s6, %s4
  $region1: #{tpu_custom_call.1} parent=0
    #allocation2 [shape = 'u8[262144]{0}', space=vmem, size = 0x40000, scoped, tag = 'input window, operand 2']
    #allocation3 [shape = 's32[2]{0}', space=sflag, size = 0x8, scoped, tag = 'scoped memory for tpu_custom_call.1']
    #allocation4 [shape = 's32[2]{0}', space=sflag, size = 0x8, scoped, tag = 'scoped memory for tpu_custom_call.1']
    #allocation5 [shape = 'u8[8192]{0}', space=vmem, size = 0x2000, scoped, tag = 'output window, operand 0']
    %8 = vsyncpa [#allocation3], 0
    %s9 = scalar_lea.sflag [#allocation3], 1
    %10 = vsyncpa %s9, 0
    %11 = vsyncpa [#allocation4], 0
    %s12 = scalar_lea.sflag [#allocation4], 1
    %13 = vsyncpa %s12, 0
    loop: start=0, step=1, limit=6
    $region2: #{tpu_custom_call.1} parent=1 // loop_pre_header
      _
    $region3: #{tpu_custom_call.1} parent=1 // loop_header
      %s15 = sphi 0, %s19
      %p16 = scmp.ge.s32.totalorder %s15, 6
      %s22 = sphi 0, %s41
      %s23 = sphi 0, %s37
      %s24 = sphi 0, %s33
      %s25 = sphi 0, %s22
      %s26 = sphi 0, %s23
      %s27 = sphi 0, %s24
      %s28 = sphi 0, %s25
      %s29 = sphi 0, %s26
      %s30 = sphi 0, %s27
      %s46 = sphi 0, %s48
      %s49 = sphi 0, %s46
      %s50 = sphi 0, %s49
      %s66 = sphi 0, %s50
      %s74 = sphi 0, %s76
      %s77 = sphi 0, %s74
      %s78 = sphi 0, %s77
      %s94 = sphi 0, %s78
      %s102 = sphi 0, %s104
      %s105 = sphi 0, %s102
      %s106 = sphi 0, %s105
      %s122 = sphi 0, %s106
      %s130 = sphi 0, %s132
      %s133 = sphi 0, %s130
      %s134 = sphi 0, %s133
      %s150 = sphi 0, %s134
    $region4: #{tpu_custom_call.1} parent=1 // loop_header_branch
      %18 = sbr.rel (%p16) target = $region8
    $region5: #{tpu_custom_call.1} parent=1 // loop_body
      %s20 = ssub.s32 %s15, 1
      %s21 = ssub.s32 %s15, 2
      %s31 = sadd.s32 1, %s24
      %p32 = scmp.ge.s32.totalorder %s31, 2
      %s33 = scalar_select %p32, 0, %s31
      %s34 = sadd.s32 1, %s23
      %s35 = scalar_select %p32, %s34, %s23
      %p36 = scmp.ge.s32.totalorder %s35, 2
      %s37 = scalar_select %p36, 0, %s35
      %s38 = sadd.s32 1, %s22
      %s39 = scalar_select %p36, %s38, %s22
      %p40 = scmp.ge.s32.totalorder %s39, 1
      %s41 = scalar_select %p40, 0, %s39
      %s42 = ssub.s32 %s23, %s37
      %s43 = ssub.s32 %s22, %s41
      %s44 = sor.u32 %s42, %s43
      %p45 = scmp.eq.s32.totalorder %s44, 0
      %s47 = sadd.s32 %s46, 1
      %s48 = scalar_select %p45, %s46, %s47
      %p51 = pneg %p45
      %p52 = scmp.eq.s32.totalorder %s15, 3
      %p53 = por %p51, %p52
      %p54 = scmp.ne.s32.totalorder %s46, %s49
      %p55 = scmp.eq.s32.totalorder %s15, 0
      %p56 = por %p54, %p55
      %p57 = scmp.ne.s32.totalorder %s46, %s49
      %p58 = scmp.eq.s32.totalorder %s20, 3
      %p59 = por %p57, %p58
      %p60 = scmp.ne.s32.totalorder %s49, %s50
      %p61 = scmp.eq.s32.totalorder %s20, 0
      %p62 = por %p60, %p61
      %p63 = scmp.ne.s32.totalorder %s49, %s50
      %p64 = scmp.eq.s32.totalorder %s21, 3
      %p65 = por %p63, %p64
      %p67 = scmp.ne.s32.totalorder %s50, %s66
      %p68 = scmp.eq.s32.totalorder %s21, 0
      %p69 = por %p67, %p68
      %s70 = ssub.s32 %s23, %s37
      %s71 = ssub.s32 %s22, %s41
      %s72 = sor.u32 %s70, %s71
      %p73 = scmp.eq.s32.totalorder %s72, 0
      %s75 = sadd.s32 %s74, 1
      %s76 = scalar_select %p73, %s74, %s75
      %p79 = pneg %p73
      %p80 = scmp.eq.s32.totalorder %s15, 3
      %p81 = por %p79, %p80
      %p82 = scmp.ne.s32.totalorder %s74, %s77
      %p83 = scmp.eq.s32.totalorder %s15, 0
      %p84 = por %p82, %p83
      %p85 = scmp.ne.s32.totalorder %s74, %s77
      %p86 = scmp.eq.s32.totalorder %s20, 3
      %p87 = por %p85, %p86
      %p88 = scmp.ne.s32.totalorder %s77, %s78
      %p89 = scmp.eq.s32.totalorder %s20, 0
      %p90 = por %p88, %p89
      %p91 = scmp.ne.s32.totalorder %s77, %s78
      %p92 = scmp.eq.s32.totalorder %s21, 3
      %p93 = por %p91, %p92
      %p95 = scmp.ne.s32.totalorder %s78, %s94
      %p96 = scmp.eq.s32.totalorder %s21, 0
      %p97 = por %p95, %p96
      %s98 = ssub.s32 %s23, %s37
      %s99 = ssub.s32 %s24, %s33
      %s100 = sor.u32 %s98, %s99
      %p101 = scmp.eq.s32.totalorder %s100, 0
      %s103 = sadd.s32 %s102, 1
      %s104 = scalar_select %p101, %s102, %s103
      %p107 = pneg %p101
      %p108 = scmp.eq.s32.totalorder %s15, 3
      %p109 = por %p107, %p108
      %p110 = scmp.ne.s32.totalorder %s102, %s105
      %p111 = scmp.eq.s32.totalorder %s15, 0
      %p112 = por %p110, %p111
      %p113 = scmp.ne.s32.totalorder %s102, %s105
      %p114 = scmp.eq.s32.totalorder %s20, 3
      %p115 = por %p113, %p114
      %p116 = scmp.ne.s32.totalorder %s105, %s106
      %p117 = scmp.eq.s32.totalorder %s20, 0
      %p118 = por %p116, %p117
      %p119 = scmp.ne.s32.totalorder %s105, %s106
      %p120 = scmp.eq.s32.totalorder %s21, 3
      %p121 = por %p119, %p120
      %p123 = scmp.ne.s32.totalorder %s106, %s122
      %p124 = scmp.eq.s32.totalorder %s21, 0
      %p125 = por %p123, %p124
      %s126 = ssub.s32 %s22, %s41
      %s127 = ssub.s32 %s23, %s37
      %s128 = sor.u32 %s126, %s127
      %p129 = scmp.eq.s32.totalorder %s128, 0
      %s131 = sadd.s32 %s130, 1
      %s132 = scalar_select %p129, %s130, %s131
      %p135 = pneg %p129
      %p136 = scmp.eq.s32.totalorder %s15, 3
      %p137 = por %p135, %p136
      %p138 = scmp.ne.s32.totalorder %s130, %s133
      %p139 = scmp.eq.s32.totalorder %s15, 0
      %p140 = por %p138, %p139
      %p141 = scmp.ne.s32.totalorder %s130, %s133
      %p142 = scmp.eq.s32.totalorder %s20, 3
      %p143 = por %p141, %p142
      %p144 = scmp.ne.s32.totalorder %s133, %s134
      %p145 = scmp.eq.s32.totalorder %s20, 0
      %p146 = por %p144, %p145
      %p147 = scmp.ne.s32.totalorder %s133, %s134
      %p148 = scmp.eq.s32.totalorder %s21, 3
      %p149 = por %p147, %p148
      %p151 = scmp.ne.s32.totalorder %s134, %s150
      %p152 = scmp.eq.s32.totalorder %s21, 0
      %p153 = por %p151, %p152
      %p154 = scmp.le.s32.totalorder 1, %s15
      %p155 = scmp.lt.s32.totalorder %s15, 5
      %p156 = pnand %p154, %p155
      %p157 = pneg %p156
      // Predicated region
      $region9: #{tpu_custom_call.1} parent=5 // pred_check
        _
      $region10: #{tpu_custom_call.1} parent=5 // pred_check_branch
        %159 = sbr.rel (%p156) target = $region12
      $region11: #{tpu_custom_call.1} parent=5 // pred_region
        %s160 = ssub.s32 %s15, 1
      $region12: #{tpu_custom_call.1} parent=5 // pred_fallthru
        _
      %p161 = scmp.lt.s32.totalorder %s15, 4
      // Predicated region
      $region13: #{tpu_custom_call.1} parent=5 // pred_check
        %p162 = pneg %p161
      $region14: #{tpu_custom_call.1} parent=5 // pred_check_branch
        %164 = sbr.rel (%p162) target = $region16
      $region15: #{tpu_custom_call.1} parent=5 // pred_region
        // Predicated region
        $region17: #{tpu_custom_call.1} parent=15 // pred_check
          %p165 = pneg %p56
        $region18: #{tpu_custom_call.1} parent=15 // pred_check_branch
          %167 = sbr.rel (%p165) target = $region20
        $region19: #{tpu_custom_call.1} parent=15 // pred_region
          %p168 = scmp.lt.s32.totalorder %s23, 1
          %s169 = scalar_select %p168, %s23, 1
          %p170 = scmp.lt.s32.totalorder %s22, 0
          %s171 = scalar_select %p170, %s22, 0
          %s172 = sadd.s32 %s171, %s169
          %s173 = smul.addr %s172, 8
          %s174 = scalar_lea.vmem %s0, %s173
        $region20: #{tpu_custom_call.1} parent=15 // pred_fallthru
          _
        // Predicated region
        $region21: #{tpu_custom_call.1} parent=15 // pred_check
          %p175 = pneg %p84
        $region22: #{tpu_custom_call.1} parent=15 // pred_check_branch
          %177 = sbr.rel (%p175) target = $region24
        $region23: #{tpu_custom_call.1} parent=15 // pred_region
          %p178 = scmp.lt.s32.totalorder %s23, 1
          %s179 = scalar_select %p178, %s23, 1
          %p180 = scmp.lt.s32.totalorder %s22, 0
          %s181 = scalar_select %p180, %s22, 0
          %s182 = sadd.s32 %s181, %s179
          %s183 = smul.addr %s182, 8
          %s184 = scalar_lea.vmem %s1, %s183
        $region24: #{tpu_custom_call.1} parent=15 // pred_fallthru
          _
        // Predicated region
        $region25: #{tpu_custom_call.1} parent=15 // pred_check
          %p185 = pneg %p112
        $region26: #{tpu_custom_call.1} parent=15 // pred_check_branch
          %187 = sbr.rel (%p185) target = $region28
        $region27: #{tpu_custom_call.1} parent=15 // pred_region
          %s188 = sand.u32 %s102, 1
          %s189 = scalar_lea.sflag [#allocation3], %s188
          %s190 = sand.u32 %s102, 1
          %s191 = smul.addr %s190, 256
          %s192 = scalar_lea.vmem [#allocation2], %s191
          %s193 = smul.u32 64, %s24
          %s195 = ssub.s32 4096, 4096
          %196 = vsyncadd %s189, %s195
          %s197 = smul.addr %s23, 128
          %s198 = sadd.s32 %s193, %s197
          %s199 = smul.addr %s198, 64
          %s200 = scalar_lea.hbm %s2, %s199
          %s201 = sshll.u32 %s192, 4
          %s202 = int_to_ptr.vmem [resolvable:$true] %s201
          %207 = dma.hbm_to_vmem [thread:$0]  %s200, 4096, %s202, %s189, 64, 64, 4
        $region28: #{tpu_custom_call.1} parent=15 // pred_fallthru
          _
      $region16: #{tpu_custom_call.1} parent=5 // pred_fallthru
        _
      %p208 = scmp.le.s32.totalorder 1, %s15
      %p209 = scmp.lt.s32.totalorder %s15, 5
      %p210 = pnand %p208, %p209
      %p211 = pneg %p210
      // Predicated region
      $region29: #{tpu_custom_call.1} parent=5 // pred_check
        _
      $region30: #{tpu_custom_call.1} parent=5 // pred_check_branch
        %213 = sbr.rel (%p210) target = $region32
      $region31: #{tpu_custom_call.1} parent=5 // pred_region
        %s214 = ssub.s32 %s15, 1
        %s215 = sand.u32 %s105, 1
        %s216 = scalar_lea.sflag [#allocation3], %s215
        %s217 = sand.u32 %s105, 1
        %s218 = smul.addr %s217, 256
        %s219 = scalar_lea.vmem [#allocation2], %s218
        // Predicated region
        $region33: #{tpu_custom_call.1} parent=31 // pred_check
          %p220 = pneg %p118
        $region34: #{tpu_custom_call.1} parent=31 // pred_check_branch
          %222 = sbr.rel (%p220) target = $region36
        $region35: #{tpu_custom_call.1} parent=31 // pred_region
          %223 = dma.done %s216, 4096
        $region36: #{tpu_custom_call.1} parent=31 // pred_fallthru
          _
        %p224 = scmp.lt.s32.totalorder %s26, 1
        %s225 = scalar_select %p224, %s26, 1
        %p226 = scmp.lt.s32.totalorder %s25, 0
        %s227 = scalar_select %p226, %s25, 0
        %s228 = sadd.s32 %s227, %s225
        %s229 = smul.addr %s228, 8
        %s230 = scalar_lea.vmem %s0, %s229
        %p231 = pneg %p62
        %p232 = pneg %p59
        %p233 = scmp.lt.s32.totalorder %s26, 1
        %s234 = scalar_select %p233, %s26, 1
        %p235 = scmp.lt.s32.totalorder %s25, 0
        %s236 = scalar_select %p235, %s25, 0
        %s237 = sadd.s32 %s236, %s234
        %s238 = smul.addr %s237, 8
        %s239 = scalar_lea.vmem %s1, %s238
        %p240 = pneg %p90
        %p241 = pneg %p87
        %s242 = sand.u32 %s105, 1
        %s243 = scalar_lea.sflag [#allocation3], %s242
        %s244 = sand.u32 %s105, 1
        %s245 = smul.addr %s244, 256
        %s246 = scalar_lea.vmem [#allocation2], %s245
        %p247 = pneg %p118
        %p248 = pneg %p115
        %p249 = pneg %p146
        %p250 = pneg %p143
        %s251 = sand.u32 %s133, 1
        %s252 = scalar_lea.sflag [#allocation4], %s251
        %s253 = sand.u32 %s133, 1
        %s254 = smul.addr %s253, 8
        %s255 = scalar_lea.vmem [#allocation5], %s254
        %p256 = scmp.lt.s32.totalorder %s26, 1
        %s257 = scalar_select %p256, %s26, 1
        %p258 = scmp.lt.s32.totalorder %s25, 0
        %s259 = scalar_select %p258, %s25, 0
        %s260 = sadd.s32 %s259, %s257
        %s261 = smul.addr %s260, 8
        %s262 = scalar_lea.vmem %s0, %s261
        %p263 = scmp.lt.s32.totalorder %s26, 1
        %s264 = scalar_select %p263, %s26, 1
        %p265 = scmp.lt.s32.totalorder %s25, 0
        %s266 = scalar_select %p265, %s25, 0
        %s267 = sadd.s32 %s266, %s264
        %s268 = smul.addr %s267, 8
        %s269 = scalar_lea.vmem %s1, %s268
        %s270 = smul.u32 64, %s27
        %p272 = scmp.eq.s32.totalorder %s27, 0
        // Predicated region
        $region37: #{tpu_custom_call.1} parent=31 // pred_check
          %p273 = pneg %p272
        $region38: #{tpu_custom_call.1} parent=31 // pred_check_branch
          %275 = sbr.rel (%p273) target = $region40
        $region39: #{tpu_custom_call.1} parent=31 // pred_region
          %276 = vst [vmem:[%s255] sm:$0xff] 0.0
        $region40: #{tpu_custom_call.1} parent=31 // pred_fallthru
          _
        %v277 = vld [vmem:[%s262] sm:$0xff]
        %v278 = vld [vmem:[%s269] sm:$0xff]
        %v279 = vlaneseq
        %v280 = vand.u32 %v279, 127
        %281 = vset.pattern.permute.xlu0 0
        %282 = vperm.xlu0 %281, %v278
        %v283 = vpop.permute.xlu0 %282
        %vm284 = vcmp.lt.s32.totalorder %v280, %v283
        %v285 = vsel %vm284, %v277, 4294967295
        %s286 = smul.u32 %s27, 512
        %v287 = vstv %s286
        %v288 = vadd.s32 %v287, %v280
        %289 = vset.pattern.permute.xlu0 0
        %290 = vperm.xlu0 %289, %v285
        %v291 = vpop.permute.xlu0 %290
        %vm292 = vcmp.eq.s32.totalorder %v291, %v288
        %v293 = vsel %vm292, 1, 0
        %v294 = vcvt.s32.f32 %v293
        %v295 = vadd.f32 %v294, 0.0
        %296 = vset.pattern.permute.xlu0 1
        %297 = vperm.xlu0 %296, %v285
        %v298 = vpop.permute.xlu0 %297
        %vm299 = vcmp.eq.s32.totalorder %v298, %v288
        %v300 = vsel %vm299, 1, 0
        %v301 = vcvt.s32.f32 %v300
        %v302 = vadd.f32 %v295, %v301
        %303 = vset.pattern.permute.xlu0 2
        %304 = vperm.xlu0 %303, %v285
        %v305 = vpop.permute.xlu0 %304
        %vm306 = vcmp.eq.s32.totalorder %v305, %v288
        %v307 = vsel %vm306, 1, 0
        %v308 = vcvt.s32.f32 %v307
        %v309 = vadd.f32 %v302, %v308
        %310 = vset.pattern.permute.xlu0 3
        %311 = vperm.xlu0 %310, %v285
        %v312 = vpop.permute.xlu0 %311
        %vm313 = vcmp.eq.s32.totalorder %v312, %v288
        %v314 = vsel %vm313, 1, 0
        %v315 = vcvt.s32.f32 %v314
        %v316 = vadd.f32 %v309, %v315
        %317 = vset.pattern.permute.xlu0 4
        %318 = vperm.xlu0 %317, %v285
        %v319 = vpop.permute.xlu0 %318
        %vm320 = vcmp.eq.s32.totalorder %v319, %v288
        %v321 = vsel %vm320, 1, 0
        %v322 = vcvt.s32.f32 %v321
        %v323 = vadd.f32 %v316, %v322
        %324 = vset.pattern.permute.xlu0 5
        %325 = vperm.xlu0 %324, %v285
        %v326 = vpop.permute.xlu0 %325
        %vm327 = vcmp.eq.s32.totalorder %v326, %v288
        %v328 = vsel %vm327, 1, 0
        %v329 = vcvt.s32.f32 %v328
        %v330 = vadd.f32 %v323, %v329
        %331 = vset.pattern.permute.xlu0 6
        %332 = vperm.xlu0 %331, %v285
        %v333 = vpop.permute.xlu0 %332
        %vm334 = vcmp.eq.s32.totalorder %v333, %v288
        %v335 = vsel %vm334, 1, 0
        %v336 = vcvt.s32.f32 %v335
        %v337 = vadd.f32 %v330, %v336
        %338 = vset.pattern.permute.xlu0 7
        %339 = vperm.xlu0 %338, %v285
        %v340 = vpop.permute.xlu0 %339
        %vm341 = vcmp.eq.s32.totalorder %v340, %v288
        %v342 = vsel %vm341, 1, 0
        %v343 = vcvt.s32.f32 %v342
        %v344 = vadd.f32 %v337, %v343
        %345 = vset.pattern.permute.xlu0 8
        %346 = vperm.xlu0 %345, %v285
        %v347 = vpop.permute.xlu0 %346
        %vm348 = vcmp.eq.s32.totalorder %v347, %v288
        %v349 = vsel %vm348, 1, 0
        %v350 = vcvt.s32.f32 %v349
        %v351 = vadd.f32 %v344, %v350
        %352 = vset.pattern.permute.xlu0 9
        %353 = vperm.xlu0 %352, %v285
        %v354 = vpop.permute.xlu0 %353
        %vm355 = vcmp.eq.s32.totalorder %v354, %v288
        %v356 = vsel %vm355, 1, 0
        %v357 = vcvt.s32.f32 %v356
        %v358 = vadd.f32 %v351, %v357
        %359 = vset.pattern.permute.xlu0 10
        %360 = vperm.xlu0 %359, %v285
        %v361 = vpop.permute.xlu0 %360
        %vm362 = vcmp.eq.s32.totalorder %v361, %v288
        %v363 = vsel %vm362, 1, 0
        %v364 = vcvt.s32.f32 %v363
        %v365 = vadd.f32 %v358, %v364
        %366 = vset.pattern.permute.xlu0 11
        %367 = vperm.xlu0 %366, %v285
        %v368 = vpop.permute.xlu0 %367
        %vm369 = vcmp.eq.s32.totalorder %v368, %v288
        %v370 = vsel %vm369, 1, 0
        %v371 = vcvt.s32.f32 %v370
        %v372 = vadd.f32 %v365, %v371
        %373 = vset.pattern.permute.xlu0 12
        %374 = vperm.xlu0 %373, %v285
        %v375 = vpop.permute.xlu0 %374
        %vm376 = vcmp.eq.s32.totalorder %v375, %v288
        %v377 = vsel %vm376, 1, 0
        %v378 = vcvt.s32.f32 %v377
        %v379 = vadd.f32 %v372, %v378
        %380 = vset.pattern.permute.xlu0 13
        %381 = vperm.xlu0 %380, %v285
        %v382 = vpop.permute.xlu0 %381
        %vm383 = vcmp.eq.s32.totalorder %v382, %v288
        %v384 = vsel %vm383, 1, 0
        %v385 = vcvt.s32.f32 %v384
        %v386 = vadd.f32 %v379, %v385
        %387 = vset.pattern.permute.xlu0 14
        %388 = vperm.xlu0 %387, %v285
        %v389 = vpop.permute.xlu0 %388
        %vm390 = vcmp.eq.s32.totalorder %v389, %v288
        %v391 = vsel %vm390, 1, 0
        %v392 = vcvt.s32.f32 %v391
        %v393 = vadd.f32 %v386, %v392
        %394 = vset.pattern.permute.xlu0 15
        %395 = vperm.xlu0 %394, %v285
        %v396 = vpop.permute.xlu0 %395
        %vm397 = vcmp.eq.s32.totalorder %v396, %v288
        %v398 = vsel %vm397, 1, 0
        %v399 = vcvt.s32.f32 %v398
        %v400 = vadd.f32 %v393, %v399
        %v401 = vld [vmem:[%s219] sm:$0xf]
        %v402 = vld [vmem:[%s219 + $0x4] sm:$0xf]
        %v403 = vld [vmem:[%s219 + $0x8] sm:$0xf]
        %v404 = vld [vmem:[%s219 + $0xc] sm:$0xf]
        %v405 = vld [vmem:[%s219 + $0x10] sm:$0xf]
        %v406 = vld [vmem:[%s219 + $0x14] sm:$0xf]
        %v407 = vld [vmem:[%s219 + $0x18] sm:$0xf]
        %v408 = vld [vmem:[%s219 + $0x1c] sm:$0xf]
        %v409 = vld [vmem:[%s219 + $0x20] sm:$0xf]
        %v410 = vld [vmem:[%s219 + $0x24] sm:$0xf]
        %v411 = vld [vmem:[%s219 + $0x28] sm:$0xf]
        %v412 = vld [vmem:[%s219 + $0x2c] sm:$0xf]
        %v413 = vld [vmem:[%s219 + $0x30] sm:$0xf]
        %v414 = vld [vmem:[%s219 + $0x34] sm:$0xf]
        %v415 = vld [vmem:[%s219 + $0x38] sm:$0xf]
        %v416 = vld [vmem:[%s219 + $0x3c] sm:$0xf]
        %v417 = vld [vmem:[%s255] sm:$0xff]
        %v418 = vpack.c.bf16 %v400, %v400
        %v435 = vunpack.c.l.b16 %v401
        %v436 = vunpack.c.l.b16 %v402
        %v437 = vunpack.c.l.b16 %v403
        %v438 = vunpack.c.l.b16 %v404
        %v439 = vunpack.c.l.b16 %v405
        %v440 = vunpack.c.l.b16 %v406
        %v441 = vunpack.c.l.b16 %v407
        %v442 = vunpack.c.l.b16 %v408
        %v443 = vunpack.c.l.b16 %v409
        %v444 = vunpack.c.l.b16 %v410
        %v445 = vunpack.c.l.b16 %v411
        %v446 = vunpack.c.l.b16 %v412
        %v447 = vunpack.c.l.b16 %v413
        %v448 = vunpack.c.l.b16 %v414
        %v449 = vunpack.c.l.b16 %v415
        %v450 = vunpack.c.l.b16 %v416
        %v451 = vpack.c.b16 %v436, %v435
        %v452 = vpack.c.b16 %v438, %v437
        %v453 = vpack.c.b16 %v440, %v439
        %v454 = vpack.c.b16 %v442, %v441
        %v455 = vpack.c.b16 %v444, %v443
        %v456 = vpack.c.b16 %v446, %v445
        %v457 = vpack.c.b16 %v448, %v447
        %v458 = vpack.c.b16 %v450, %v449
        %467 = vmatprep.subr.bf16.mxu0 0
        %468 = vmatpush1.bf16.msra.mxu0 %v451
        %469 = vmatprep.subr.bf16.mxu0 0
        %470 = vmatpush1.bf16.msra.mxu0 %v452
        %471 = vmatprep.subr.bf16.mxu0 0
        %472 = vmatpush1.bf16.msra.mxu0 %v453
        %473 = vmatprep.subr.bf16.mxu0 0
        %474 = vmatpush1.bf16.msra.mxu0 %v454
        %475 = vmatprep.subr.bf16.mxu0 0
        %476 = vmatpush1.bf16.msra.mxu0 %v455
        %477 = vmatprep.subr.bf16.mxu0 0
        %478 = vmatpush1.bf16.msra.mxu0 %v456
        %479 = vmatprep.subr.bf16.mxu0 0
        %480 = vmatpush1.bf16.msra.mxu0 %v457
        %481 = vmatprep.subr.bf16.mxu0 0
        %482 = vmatpush1.bf16.msra.mxu0 %v458
        %483 = vmatprep.subr.bf16.mxu0 0
        %484 = vmatpush1.bf16.msra.mxu0 0
        %485 = vmatprep.subr.bf16.mxu0 0
        %486 = vmatpush1.bf16.msra.mxu0 0
        %487 = vmatprep.subr.bf16.mxu0 0
        %488 = vmatpush1.bf16.msra.mxu0 0
        %489 = vmatprep.subr.bf16.mxu0 0
        %490 = vmatpush1.bf16.msra.mxu0 0
        %491 = vmatprep.subr.bf16.mxu0 0
        %492 = vmatpush1.bf16.msra.mxu0 0
        %493 = vmatprep.subr.bf16.mxu0 0
        %494 = vmatpush1.bf16.msra.mxu0 0
        %495 = vmatprep.subr.bf16.mxu0 0
        %496 = vmatpush1.bf16.msra.mxu0 0
        %497 = vmatprep.subr.bf16.mxu0 0
        %498 = vmatpush1.bf16.msra.mxu0 0
        %499 = vmatprep.mubr.bf16.mxu0 0
        %500 = vmatmul.mubr.bf16.gmra.mrb[0].mxu0 %v418
        %v501 = vpop.f32.mrb[0].mxu0
        %v502 = vadd.f32 0.0, %v501
        %v503 = vpop.f32.mrb[0].mxu0
        %v504 = vpop.f32.mrb[0].mxu0
        %v505 = vpop.f32.mrb[0].mxu0
        %506 = vdwg.mxu0
        %v507 = vadd.f32 %v417, %v502
        %508 = vst [vmem:[%s255] sm:$0xff] %v507
        %s509 = sadd.s32 %s286, 128
        %v510 = vstv %s509
        %v511 = vadd.s32 %v510, %v280
        %vm512 = vcmp.eq.s32.totalorder %v291, %v511
        %v513 = vsel %vm512, 1, 0
        %v514 = vcvt.s32.f32 %v513
        %v515 = vadd.f32 %v514, 0.0
        %vm516 = vcmp.eq.s32.totalorder %v298, %v511
        %v517 = vsel %vm516, 1, 0
        %v518 = vcvt.s32.f32 %v517
        %v519 = vadd.f32 %v515, %v518
        %vm520 = vcmp.eq.s32.totalorder %v305, %v511
        %v521 = vsel %vm520, 1, 0
        %v522 = vcvt.s32.f32 %v521
        %v523 = vadd.f32 %v519, %v522
        %vm524 = vcmp.eq.s32.totalorder %v312, %v511
        %v525 = vsel %vm524, 1, 0
        %v526 = vcvt.s32.f32 %v525
        %v527 = vadd.f32 %v523, %v526
        %vm528 = vcmp.eq.s32.totalorder %v319, %v511
        %v529 = vsel %vm528, 1, 0
        %v530 = vcvt.s32.f32 %v529
        %v531 = vadd.f32 %v527, %v530
        %vm532 = vcmp.eq.s32.totalorder %v326, %v511
        %v533 = vsel %vm532, 1, 0
        %v534 = vcvt.s32.f32 %v533
        %v535 = vadd.f32 %v531, %v534
        %vm536 = vcmp.eq.s32.totalorder %v333, %v511
        %v537 = vsel %vm536, 1, 0
        %v538 = vcvt.s32.f32 %v537
        %v539 = vadd.f32 %v535, %v538
        %vm540 = vcmp.eq.s32.totalorder %v340, %v511
        %v541 = vsel %vm540, 1, 0
        %v542 = vcvt.s32.f32 %v541
        %v543 = vadd.f32 %v539, %v542
        %vm544 = vcmp.eq.s32.totalorder %v347, %v511
        %v545 = vsel %vm544, 1, 0
        %v546 = vcvt.s32.f32 %v545
        %v547 = vadd.f32 %v543, %v546
        %vm548 = vcmp.eq.s32.totalorder %v354, %v511
        %v549 = vsel %vm548, 1, 0
        %v550 = vcvt.s32.f32 %v549
        %v551 = vadd.f32 %v547, %v550
        %vm552 = vcmp.eq.s32.totalorder %v361, %v511
        %v553 = vsel %vm552, 1, 0
        %v554 = vcvt.s32.f32 %v553
        %v555 = vadd.f32 %v551, %v554
        %vm556 = vcmp.eq.s32.totalorder %v368, %v511
        %v557 = vsel %vm556, 1, 0
        %v558 = vcvt.s32.f32 %v557
        %v559 = vadd.f32 %v555, %v558
        %vm560 = vcmp.eq.s32.totalorder %v375, %v511
        %v561 = vsel %vm560, 1, 0
        %v562 = vcvt.s32.f32 %v561
        %v563 = vadd.f32 %v559, %v562
        %vm564 = vcmp.eq.s32.totalorder %v382, %v511
        %v565 = vsel %vm564, 1, 0
        %v566 = vcvt.s32.f32 %v565
        %v567 = vadd.f32 %v563, %v566
        %vm568 = vcmp.eq.s32.totalorder %v389, %v511
        %v569 = vsel %vm568, 1, 0
        %v570 = vcvt.s32.f32 %v569
        %v571 = vadd.f32 %v567, %v570
        %vm572 = vcmp.eq.s32.totalorder %v396, %v511
        %v573 = vsel %vm572, 1, 0
        %v574 = vcvt.s32.f32 %v573
        %v575 = vadd.f32 %v571, %v574
        %v576 = vld [vmem:[%s219 + $0x40] sm:$0xf]
        %v577 = vld [vmem:[%s219 + $0x44] sm:$0xf]
        %v578 = vld [vmem:[%s219 + $0x48] sm:$0xf]
        %v579 = vld [vmem:[%s219 + $0x4c] sm:$0xf]
        %v580 = vld [vmem:[%s219 + $0x50] sm:$0xf]
        %v581 = vld [vmem:[%s219 + $0x54] sm:$0xf]
        %v582 = vld [vmem:[%s219 + $0x58] sm:$0xf]
        %v583 = vld [vmem:[%s219 + $0x5c] sm:$0xf]
        %v584 = vld [vmem:[%s219 + $0x60] sm:$0xf]
        %v585 = vld [vmem:[%s219 + $0x64] sm:$0xf]
        %v586 = vld [vmem:[%s219 + $0x68] sm:$0xf]
        %v587 = vld [vmem:[%s219 + $0x6c] sm:$0xf]
        %v588 = vld [vmem:[%s219 + $0x70] sm:$0xf]
        %v589 = vld [vmem:[%s219 + $0x74] sm:$0xf]
        %v590 = vld [vmem:[%s219 + $0x78] sm:$0xf]
        %v591 = vld [vmem:[%s219 + $0x7c] sm:$0xf]
        %v592 = vld [vmem:[%s255] sm:$0xff]
        %v593 = vpack.c.bf16 %v575, %v575
        %v610 = vunpack.c.l.b16 %v576
        %v611 = vunpack.c.l.b16 %v577
        %v612 = vunpack.c.l.b16 %v578
        %v613 = vunpack.c.l.b16 %v579
        %v614 = vunpack.c.l.b16 %v580
        %v615 = vunpack.c.l.b16 %v581
        %v616 = vunpack.c.l.b16 %v582
        %v617 = vunpack.c.l.b16 %v583
        %v618 = vunpack.c.l.b16 %v584
        %v619 = vunpack.c.l.b16 %v585
        %v620 = vunpack.c.l.b16 %v586
        %v621 = vunpack.c.l.b16 %v587
        %v622 = vunpack.c.l.b16 %v588
        %v623 = vunpack.c.l.b16 %v589
        %v624 = vunpack.c.l.b16 %v590
        %v625 = vunpack.c.l.b16 %v591
        %v626 = vpack.c.b16 %v611, %v610
        %v627 = vpack.c.b16 %v613, %v612
        %v628 = vpack.c.b16 %v615, %v614
        %v629 = vpack.c.b16 %v617, %v616
        %v630 = vpack.c.b16 %v619, %v618
        %v631 = vpack.c.b16 %v621, %v620
        %v632 = vpack.c.b16 %v623, %v622
        %v633 = vpack.c.b16 %v625, %v624
        %642 = vmatprep.subr.bf16.mxu0 0
        %643 = vmatpush1.bf16.msra.mxu0 %v626
        %644 = vmatprep.subr.bf16.mxu0 0
        %645 = vmatpush1.bf16.msra.mxu0 %v627
        %646 = vmatprep.subr.bf16.mxu0 0
        %647 = vmatpush1.bf16.msra.mxu0 %v628
        %648 = vmatprep.subr.bf16.mxu0 0
        %649 = vmatpush1.bf16.msra.mxu0 %v629
        %650 = vmatprep.subr.bf16.mxu0 0
        %651 = vmatpush1.bf16.msra.mxu0 %v630
        %652 = vmatprep.subr.bf16.mxu0 0
        %653 = vmatpush1.bf16.msra.mxu0 %v631
        %654 = vmatprep.subr.bf16.mxu0 0
        %655 = vmatpush1.bf16.msra.mxu0 %v632
        %656 = vmatprep.subr.bf16.mxu0 0
        %657 = vmatpush1.bf16.msra.mxu0 %v633
        %658 = vmatprep.subr.bf16.mxu0 0
        %659 = vmatpush1.bf16.msra.mxu0 0
        %660 = vmatprep.subr.bf16.mxu0 0
        %661 = vmatpush1.bf16.msra.mxu0 0
        %662 = vmatprep.subr.bf16.mxu0 0
        %663 = vmatpush1.bf16.msra.mxu0 0
        %664 = vmatprep.subr.bf16.mxu0 0
        %665 = vmatpush1.bf16.msra.mxu0 0
        %666 = vmatprep.subr.bf16.mxu0 0
        %667 = vmatpush1.bf16.msra.mxu0 0
        %668 = vmatprep.subr.bf16.mxu0 0
        %669 = vmatpush1.bf16.msra.mxu0 0
        %670 = vmatprep.subr.bf16.mxu0 0
        %671 = vmatpush1.bf16.msra.mxu0 0
        %672 = vmatprep.subr.bf16.mxu0 0
        %673 = vmatpush1.bf16.msra.mxu0 0
        %674 = vmatprep.mubr.bf16.mxu0 0
        %675 = vmatmul.mubr.bf16.gmra.mrb[0].mxu0 %v593
        %v676 = vpop.f32.mrb[0].mxu0
        %v677 = vadd.f32 0.0, %v676
        %v678 = vpop.f32.mrb[0].mxu0
        %v679 = vpop.f32.mrb[0].mxu0
        %v680 = vpop.f32.mrb[0].mxu0
        %681 = vdwg.mxu0
        %v682 = vadd.f32 %v592, %v677
        %683 = vst [vmem:[%s255] sm:$0xff] %v682
        %s684 = sadd.s32 %s286, 256
        %v685 = vstv %s684
        %v686 = vadd.s32 %v685, %v280
        %vm687 = vcmp.eq.s32.totalorder %v291, %v686
        %v688 = vsel %vm687, 1, 0
        %v689 = vcvt.s32.f32 %v688
        %v690 = vadd.f32 %v689, 0.0
        %vm691 = vcmp.eq.s32.totalorder %v298, %v686
        %v692 = vsel %vm691, 1, 0
        %v693 = vcvt.s32.f32 %v692
        %v694 = vadd.f32 %v690, %v693
        %vm695 = vcmp.eq.s32.totalorder %v305, %v686
        %v696 = vsel %vm695, 1, 0
        %v697 = vcvt.s32.f32 %v696
        %v698 = vadd.f32 %v694, %v697
        %vm699 = vcmp.eq.s32.totalorder %v312, %v686
        %v700 = vsel %vm699, 1, 0
        %v701 = vcvt.s32.f32 %v700
        %v702 = vadd.f32 %v698, %v701
        %vm703 = vcmp.eq.s32.totalorder %v319, %v686
        %v704 = vsel %vm703, 1, 0
        %v705 = vcvt.s32.f32 %v704
        %v706 = vadd.f32 %v702, %v705
        %vm707 = vcmp.eq.s32.totalorder %v326, %v686
        %v708 = vsel %vm707, 1, 0
        %v709 = vcvt.s32.f32 %v708
        %v710 = vadd.f32 %v706, %v709
        %vm711 = vcmp.eq.s32.totalorder %v333, %v686
        %v712 = vsel %vm711, 1, 0
        %v713 = vcvt.s32.f32 %v712
        %v714 = vadd.f32 %v710, %v713
        %vm715 = vcmp.eq.s32.totalorder %v340, %v686
        %v716 = vsel %vm715, 1, 0
        %v717 = vcvt.s32.f32 %v716
        %v718 = vadd.f32 %v714, %v717
        %vm719 = vcmp.eq.s32.totalorder %v347, %v686
        %v720 = vsel %vm719, 1, 0
        %v721 = vcvt.s32.f32 %v720
        %v722 = vadd.f32 %v718, %v721
        %vm723 = vcmp.eq.s32.totalorder %v354, %v686
        %v724 = vsel %vm723, 1, 0
        %v725 = vcvt.s32.f32 %v724
        %v726 = vadd.f32 %v722, %v725
        %vm727 = vcmp.eq.s32.totalorder %v361, %v686
        %v728 = vsel %vm727, 1, 0
        %v729 = vcvt.s32.f32 %v728
        %v730 = vadd.f32 %v726, %v729
        %vm731 = vcmp.eq.s32.totalorder %v368, %v686
        %v732 = vsel %vm731, 1, 0
        %v733 = vcvt.s32.f32 %v732
        %v734 = vadd.f32 %v730, %v733
        %vm735 = vcmp.eq.s32.totalorder %v375, %v686
        %v736 = vsel %vm735, 1, 0
        %v737 = vcvt.s32.f32 %v736
        %v738 = vadd.f32 %v734, %v737
        %vm739 = vcmp.eq.s32.totalorder %v382, %v686
        %v740 = vsel %vm739, 1, 0
        %v741 = vcvt.s32.f32 %v740
        %v742 = vadd.f32 %v738, %v741
        %vm743 = vcmp.eq.s32.totalorder %v389, %v686
        %v744 = vsel %vm743, 1, 0
        %v745 = vcvt.s32.f32 %v744
        %v746 = vadd.f32 %v742, %v745
        %vm747 = vcmp.eq.s32.totalorder %v396, %v686
        %v748 = vsel %vm747, 1, 0
        %v749 = vcvt.s32.f32 %v748
        %v750 = vadd.f32 %v746, %v749
        %v751 = vld [vmem:[%s219 + $0x80] sm:$0xf]
        %v752 = vld [vmem:[%s219 + $0x84] sm:$0xf]
        %v753 = vld [vmem:[%s219 + $0x88] sm:$0xf]
        %v754 = vld [vmem:[%s219 + $0x8c] sm:$0xf]
        %v755 = vld [vmem:[%s219 + $0x90] sm:$0xf]
        %v756 = vld [vmem:[%s219 + $0x94] sm:$0xf]
        %v757 = vld [vmem:[%s219 + $0x98] sm:$0xf]
        %v758 = vld [vmem:[%s219 + $0x9c] sm:$0xf]
        %v759 = vld [vmem:[%s219 + $0xa0] sm:$0xf]
        %v760 = vld [vmem:[%s219 + $0xa4] sm:$0xf]
        %v761 = vld [vmem:[%s219 + $0xa8] sm:$0xf]
        %v762 = vld [vmem:[%s219 + $0xac] sm:$0xf]
        %v763 = vld [vmem:[%s219 + $0xb0] sm:$0xf]
        %v764 = vld [vmem:[%s219 + $0xb4] sm:$0xf]
        %v765 = vld [vmem:[%s219 + $0xb8] sm:$0xf]
        %v766 = vld [vmem:[%s219 + $0xbc] sm:$0xf]
        %v767 = vld [vmem:[%s255] sm:$0xff]
        %v768 = vpack.c.bf16 %v750, %v750
        %v785 = vunpack.c.l.b16 %v751
        %v786 = vunpack.c.l.b16 %v752
        %v787 = vunpack.c.l.b16 %v753
        %v788 = vunpack.c.l.b16 %v754
        %v789 = vunpack.c.l.b16 %v755
        %v790 = vunpack.c.l.b16 %v756
        %v791 = vunpack.c.l.b16 %v757
        %v792 = vunpack.c.l.b16 %v758
        %v793 = vunpack.c.l.b16 %v759
        %v794 = vunpack.c.l.b16 %v760
        %v795 = vunpack.c.l.b16 %v761
        %v796 = vunpack.c.l.b16 %v762
        %v797 = vunpack.c.l.b16 %v763
        %v798 = vunpack.c.l.b16 %v764
        %v799 = vunpack.c.l.b16 %v765
        %v800 = vunpack.c.l.b16 %v766
        %v801 = vpack.c.b16 %v786, %v785
        %v802 = vpack.c.b16 %v788, %v787
        %v803 = vpack.c.b16 %v790, %v789
        %v804 = vpack.c.b16 %v792, %v791
        %v805 = vpack.c.b16 %v794, %v793
        %v806 = vpack.c.b16 %v796, %v795
        %v807 = vpack.c.b16 %v798, %v797
        %v808 = vpack.c.b16 %v800, %v799
        %817 = vmatprep.subr.bf16.mxu0 0
        %818 = vmatpush1.bf16.msra.mxu0 %v801
        %819 = vmatprep.subr.bf16.mxu0 0
        %820 = vmatpush1.bf16.msra.mxu0 %v802
        %821 = vmatprep.subr.bf16.mxu0 0
        %822 = vmatpush1.bf16.msra.mxu0 %v803
        %823 = vmatprep.subr.bf16.mxu0 0
        %824 = vmatpush1.bf16.msra.mxu0 %v804
        %825 = vmatprep.subr.bf16.mxu0 0
        %826 = vmatpush1.bf16.msra.mxu0 %v805
        %827 = vmatprep.subr.bf16.mxu0 0
        %828 = vmatpush1.bf16.msra.mxu0 %v806
        %829 = vmatprep.subr.bf16.mxu0 0
        %830 = vmatpush1.bf16.msra.mxu0 %v807
        %831 = vmatprep.subr.bf16.mxu0 0
        %832 = vmatpush1.bf16.msra.mxu0 %v808
        %833 = vmatprep.subr.bf16.mxu0 0
        %834 = vmatpush1.bf16.msra.mxu0 0
        %835 = vmatprep.subr.bf16.mxu0 0
        %836 = vmatpush1.bf16.msra.mxu0 0
        %837 = vmatprep.subr.bf16.mxu0 0
        %838 = vmatpush1.bf16.msra.mxu0 0
        %839 = vmatprep.subr.bf16.mxu0 0
        %840 = vmatpush1.bf16.msra.mxu0 0
        %841 = vmatprep.subr.bf16.mxu0 0
        %842 = vmatpush1.bf16.msra.mxu0 0
        %843 = vmatprep.subr.bf16.mxu0 0
        %844 = vmatpush1.bf16.msra.mxu0 0
        %845 = vmatprep.subr.bf16.mxu0 0
        %846 = vmatpush1.bf16.msra.mxu0 0
        %847 = vmatprep.subr.bf16.mxu0 0
        %848 = vmatpush1.bf16.msra.mxu0 0
        %849 = vmatprep.mubr.bf16.mxu0 0
        %850 = vmatmul.mubr.bf16.gmra.mrb[0].mxu0 %v768
        %v851 = vpop.f32.mrb[0].mxu0
        %v852 = vadd.f32 0.0, %v851
        %v853 = vpop.f32.mrb[0].mxu0
        %v854 = vpop.f32.mrb[0].mxu0
        %v855 = vpop.f32.mrb[0].mxu0
        %856 = vdwg.mxu0
        %v857 = vadd.f32 %v767, %v852
        %858 = vst [vmem:[%s255] sm:$0xff] %v857
        %s859 = sadd.s32 %s286, 384
        %v860 = vstv %s859
        %v861 = vadd.s32 %v860, %v280
        %vm862 = vcmp.eq.s32.totalorder %v291, %v861
        %v863 = vsel %vm862, 1, 0
        %v864 = vcvt.s32.f32 %v863
        %v865 = vadd.f32 %v864, 0.0
        %vm866 = vcmp.eq.s32.totalorder %v298, %v861
        %v867 = vsel %vm866, 1, 0
        %v868 = vcvt.s32.f32 %v867
        %v869 = vadd.f32 %v865, %v868
        %vm870 = vcmp.eq.s32.totalorder %v305, %v861
        %v871 = vsel %vm870, 1, 0
        %v872 = vcvt.s32.f32 %v871
        %v873 = vadd.f32 %v869, %v872
        %vm874 = vcmp.eq.s32.totalorder %v312, %v861
        %v875 = vsel %vm874, 1, 0
        %v876 = vcvt.s32.f32 %v875
        %v877 = vadd.f32 %v873, %v876
        %vm878 = vcmp.eq.s32.totalorder %v319, %v861
        %v879 = vsel %vm878, 1, 0
        %v880 = vcvt.s32.f32 %v879
        %v881 = vadd.f32 %v877, %v880
        %vm882 = vcmp.eq.s32.totalorder %v326, %v861
        %v883 = vsel %vm882, 1, 0
        %v884 = vcvt.s32.f32 %v883
        %v885 = vadd.f32 %v881, %v884
        %vm886 = vcmp.eq.s32.totalorder %v333, %v861
        %v887 = vsel %vm886, 1, 0
        %v888 = vcvt.s32.f32 %v887
        %v889 = vadd.f32 %v885, %v888
        %vm890 = vcmp.eq.s32.totalorder %v340, %v861
        %v891 = vsel %vm890, 1, 0
        %v892 = vcvt.s32.f32 %v891
        %v893 = vadd.f32 %v889, %v892
        %vm894 = vcmp.eq.s32.totalorder %v347, %v861
        %v895 = vsel %vm894, 1, 0
        %v896 = vcvt.s32.f32 %v895
        %v897 = vadd.f32 %v893, %v896
        %vm898 = vcmp.eq.s32.totalorder %v354, %v861
        %v899 = vsel %vm898, 1, 0
        %v900 = vcvt.s32.f32 %v899
        %v901 = vadd.f32 %v897, %v900
        %vm902 = vcmp.eq.s32.totalorder %v361, %v861
        %v903 = vsel %vm902, 1, 0
        %v904 = vcvt.s32.f32 %v903
        %v905 = vadd.f32 %v901, %v904
        %vm906 = vcmp.eq.s32.totalorder %v368, %v861
        %v907 = vsel %vm906, 1, 0
        %v908 = vcvt.s32.f32 %v907
        %v909 = vadd.f32 %v905, %v908
        %vm910 = vcmp.eq.s32.totalorder %v375, %v861
        %v911 = vsel %vm910, 1, 0
        %v912 = vcvt.s32.f32 %v911
        %v913 = vadd.f32 %v909, %v912
        %vm914 = vcmp.eq.s32.totalorder %v382, %v861
        %v915 = vsel %vm914, 1, 0
        %v916 = vcvt.s32.f32 %v915
        %v917 = vadd.f32 %v913, %v916
        %vm918 = vcmp.eq.s32.totalorder %v389, %v861
        %v919 = vsel %vm918, 1, 0
        %v920 = vcvt.s32.f32 %v919
        %v921 = vadd.f32 %v917, %v920
        %vm922 = vcmp.eq.s32.totalorder %v396, %v861
        %v923 = vsel %vm922, 1, 0
        %v924 = vcvt.s32.f32 %v923
        %v925 = vadd.f32 %v921, %v924
        %v926 = vld [vmem:[%s219 + $0xc0] sm:$0xf]
        %v927 = vld [vmem:[%s219 + $0xc4] sm:$0xf]
        %v928 = vld [vmem:[%s219 + $0xc8] sm:$0xf]
        %v929 = vld [vmem:[%s219 + $0xcc] sm:$0xf]
        %v930 = vld [vmem:[%s219 + $0xd0] sm:$0xf]
        %v931 = vld [vmem:[%s219 + $0xd4] sm:$0xf]
        %v932 = vld [vmem:[%s219 + $0xd8] sm:$0xf]
        %v933 = vld [vmem:[%s219 + $0xdc] sm:$0xf]
        %v934 = vld [vmem:[%s219 + $0xe0] sm:$0xf]
        %v935 = vld [vmem:[%s219 + $0xe4] sm:$0xf]
        %v936 = vld [vmem:[%s219 + $0xe8] sm:$0xf]
        %v937 = vld [vmem:[%s219 + $0xec] sm:$0xf]
        %v938 = vld [vmem:[%s219 + $0xf0] sm:$0xf]
        %v939 = vld [vmem:[%s219 + $0xf4] sm:$0xf]
        %v940 = vld [vmem:[%s219 + $0xf8] sm:$0xf]
        %v941 = vld [vmem:[%s219 + $0xfc] sm:$0xf]
        %v942 = vld [vmem:[%s255] sm:$0xff]
        %v943 = vpack.c.bf16 %v925, %v925
        %v960 = vunpack.c.l.b16 %v926
        %v961 = vunpack.c.l.b16 %v927
        %v962 = vunpack.c.l.b16 %v928
        %v963 = vunpack.c.l.b16 %v929
        %v964 = vunpack.c.l.b16 %v930
        %v965 = vunpack.c.l.b16 %v931
        %v966 = vunpack.c.l.b16 %v932
        %v967 = vunpack.c.l.b16 %v933
        %v968 = vunpack.c.l.b16 %v934
        %v969 = vunpack.c.l.b16 %v935
        %v970 = vunpack.c.l.b16 %v936
        %v971 = vunpack.c.l.b16 %v937
        %v972 = vunpack.c.l.b16 %v938
        %v973 = vunpack.c.l.b16 %v939
        %v974 = vunpack.c.l.b16 %v940
        %v975 = vunpack.c.l.b16 %v941
        %v976 = vpack.c.b16 %v961, %v960
        %v977 = vpack.c.b16 %v963, %v962
        %v978 = vpack.c.b16 %v965, %v964
        %v979 = vpack.c.b16 %v967, %v966
        %v980 = vpack.c.b16 %v969, %v968
        %v981 = vpack.c.b16 %v971, %v970
        %v982 = vpack.c.b16 %v973, %v972
        %v983 = vpack.c.b16 %v975, %v974
        %992 = vmatprep.subr.bf16.mxu0 0
        %993 = vmatpush1.bf16.msra.mxu0 %v976
        %994 = vmatprep.subr.bf16.mxu0 0
        %995 = vmatpush1.bf16.msra.mxu0 %v977
        %996 = vmatprep.subr.bf16.mxu0 0
        %997 = vmatpush1.bf16.msra.mxu0 %v978
        %998 = vmatprep.subr.bf16.mxu0 0
        %999 = vmatpush1.bf16.msra.mxu0 %v979
        %1000 = vmatprep.subr.bf16.mxu0 0
        %1001 = vmatpush1.bf16.msra.mxu0 %v980
        %1002 = vmatprep.subr.bf16.mxu0 0
        %1003 = vmatpush1.bf16.msra.mxu0 %v981
        %1004 = vmatprep.subr.bf16.mxu0 0
        %1005 = vmatpush1.bf16.msra.mxu0 %v982
        %1006 = vmatprep.subr.bf16.mxu0 0
        %1007 = vmatpush1.bf16.msra.mxu0 %v983
        %1008 = vmatprep.subr.bf16.mxu0 0
        %1009 = vmatpush1.bf16.msra.mxu0 0
        %1010 = vmatprep.subr.bf16.mxu0 0
        %1011 = vmatpush1.bf16.msra.mxu0 0
        %1012 = vmatprep.subr.bf16.mxu0 0
        %1013 = vmatpush1.bf16.msra.mxu0 0
        %1014 = vmatprep.subr.bf16.mxu0 0
        %1015 = vmatpush1.bf16.msra.mxu0 0
        %1016 = vmatprep.subr.bf16.mxu0 0
        %1017 = vmatpush1.bf16.msra.mxu0 0
        %1018 = vmatprep.subr.bf16.mxu0 0
        %1019 = vmatpush1.bf16.msra.mxu0 0
        %1020 = vmatprep.subr.bf16.mxu0 0
        %1021 = vmatpush1.bf16.msra.mxu0 0
        %1022 = vmatprep.subr.bf16.mxu0 0
        %1023 = vmatpush1.bf16.msra.mxu0 0
        %1024 = vmatprep.mubr.bf16.mxu0 0
        %1025 = vmatmul.mubr.bf16.gmra.mrb[0].mxu0 %v943
        %v1026 = vpop.f32.mrb[0].mxu0
        %v1027 = vadd.f32 0.0, %v1026
        %v1028 = vpop.f32.mrb[0].mxu0
        %v1029 = vpop.f32.mrb[0].mxu0
        %v1030 = vpop.f32.mrb[0].mxu0
        %1031 = vdwg.mxu0
        %v1032 = vadd.f32 %v942, %v1027
        %1033 = vst [vmem:[%s255] sm:$0xff] %v1032
        %s1034 = sand.u32 %s133, 1
        %s1035 = scalar_lea.sflag [#allocation4], %s1034
        %s1036 = sand.u32 %s133, 1
        %s1037 = smul.addr %s1036, 8
        %s1038 = scalar_lea.vmem [#allocation5], %s1037
        // Predicated region
        $region41: #{tpu_custom_call.1} parent=31 // pred_check
          %p1039 = pneg %p143
        $region42: #{tpu_custom_call.1} parent=31 // pred_check_branch
          %1041 = sbr.rel (%p1039) target = $region44
        $region43: #{tpu_custom_call.1} parent=31 // pred_region
          %s1043 = ssub.s32 128, 128
          %1044 = vsyncadd %s1035, %s1043
          %s1045 = smul.addr %s25, 2
          %s1046 = sadd.s32 %s26, %s1045
          %s1047 = smul.addr %s1046, 128
          %s1048 = scalar_lea.hbm %s3, %s1047
          %s1050 = sshll.u32 %s1038, 4
          %s1051 = int_to_ptr.vmem [resolvable:$true] %s1050
          %1053 = dma.vmem_to_hbm [thread:$0]  %s1051, 128, %s1048, %s1035
        $region44: #{tpu_custom_call.1} parent=31 // pred_fallthru
          _
      $region32: #{tpu_custom_call.1} parent=5 // pred_fallthru
        _
      %p1054 = scmp.le.s32.totalorder 2, %s15
      // Predicated region
      $region45: #{tpu_custom_call.1} parent=5 // pred_check
        %p1055 = pneg %p1054
      $region46: #{tpu_custom_call.1} parent=5 // pred_check_branch
        %1057 = sbr.rel (%p1055) target = $region48
      $region47: #{tpu_custom_call.1} parent=5 // pred_region
        %s1058 = ssub.s32 %s15, 2
        // Predicated region
        $region49: #{tpu_custom_call.1} parent=47 // pred_check
          %p1059 = pneg %p149
        $region50: #{tpu_custom_call.1} parent=47 // pred_check_branch
          %1061 = sbr.rel (%p1059) target = $region52
        $region51: #{tpu_custom_call.1} parent=47 // pred_region
          %s1062 = sand.u32 %s134, 1
          %s1063 = scalar_lea.sflag [#allocation4], %s1062
          %s1064 = sand.u32 %s134, 1
          %s1065 = smul.addr %s1064, 8
          %s1066 = scalar_lea.vmem [#allocation5], %s1065
          %1067 = dma.done %s1063, 128
        $region52: #{tpu_custom_call.1} parent=47 // pred_fallthru
          _
      $region48: #{tpu_custom_call.1} parent=5 // pred_fallthru
        _
    $region6: #{tpu_custom_call.1} parent=1 // loop_footer
      %s19 = sadd.s32 1, %s15
    $region7: #{tpu_custom_call.1} parent=1 // loop_footer_branch
      %14 = sbr.rel target = $region3
    $region8: #{tpu_custom_call.1} parent=1 // loop_exit
      _
    %1068 = vsyncpa [#allocation3], 1
    %s1069 = scalar_lea.sflag [#allocation3], 1
    %1070 = vsyncpa %s1069, 1
    %1071 = vsyncpa [#allocation4], 1
    %s1072 = scalar_lea.sflag [#allocation4], 1
    %1073 = vsyncpa %s1072, 1

</llo_original>
